<compile_context>
chip_gen: v5e
topology: v5e:2x2
jax: 0.10.0
libtpu: 0.0.40
codegen_flags: <defaults>
</compile_context>

<pallas_src>
import functools

import jax
import jax.numpy as jnp
from jax import lax
from jax.experimental import pallas as pl
from jax.experimental.pallas import tpu as pltpu

VOCAB = 512     # stand-in for vocabulary_size=50000 (small synthetic vocab)
EMBED = 128     # embed_size from the module
BATCH = 128     # B must equal EMBED for diag(u @ v_pos) to be well-defined (as in the module)
CTX = 4         # number of context words per example: x has shape (B, CTX)
NEG = 5         # negative samples per positive (neg_sample(5, label))
TV = 128        # vocab tile size (sublane dim of the emb block; multiple of 8)


def skip_gram_loss_kernel(label_ref, x_ref, neg_ref,   # (B,1) / (B,CTX) / (B,NEG) int32 VMEM
                          emb_ref,                     # (TV, E) f32 VMEM tile of the table
                          out_ref,                     # (1, 1) f32 VMEM
                          u_acc, vpos_acc, vneg_acc,   # (B, E) f32 VMEM scratch accumulators
                          *, batch, ctx, neg, tv):
    v = pl.program_id(0)
    nv = pl.num_programs(0)

    @pl.when(v == 0)
    def _():
        u_acc[...] = jnp.zeros_like(u_acc)
        vpos_acc[...] = jnp.zeros_like(vpos_acc)
        vneg_acc[...] = jnp.zeros_like(vneg_acc)

    # Vocabulary ids covered by this tile, laid out along the lane axis.
    vocab_ids = v * tv + lax.broadcasted_iota(jnp.int32, (batch, tv), 1)   # (B, TV)
    emb = emb_ref[...]                                                     # (TV, E)

    # u_embeds partial:  one-hot(label) @ emb_tile       (duplicate-safe by construction)
    onehot_u = (vocab_ids == label_ref[...]).astype(jnp.float32)           # (B, TV)
    u_acc[...] += jnp.dot(onehot_u, emb, preferred_element_type=jnp.float32)

    # v_embeds_pos partial: (sum_c one-hot(x[:, c])) @ emb_tile  (counts handle duplicates)
    w_pos = (vocab_ids == x_ref[:, 0:1]).astype(jnp.float32)
    for c in range(1, ctx):
        w_pos += (vocab_ids == x_ref[:, c:c + 1]).astype(jnp.float32)
    vpos_acc[...] += jnp.dot(w_pos, emb, preferred_element_type=jnp.float32)

    # v_embeds_neg partial
    w_neg = (vocab_ids == neg_ref[:, 0:1]).astype(jnp.float32)
    for c in range(1, neg):
        w_neg += (vocab_ids == neg_ref[:, c:c + 1]).astype(jnp.float32)
    vneg_acc[...] += jnp.dot(w_neg, emb, preferred_element_type=jnp.float32)

    @pl.when(v == nv - 1)
    def _():
        u = u_acc[...]                                          # (B, E)
        v_pos_t = jnp.transpose(vpos_acc[...]) * (1.0 / ctx)    # (E, B) via XLU; B == E
        v_neg = vneg_acc[...] * (1.0 / neg)                     # (B, E)

        # diag(u @ v_pos)[i]  = sum_k u[i,k] * v_pos[k,i]  -> row-sum of u * v_pos.T
        diag1 = jnp.sum(u * v_pos_t, axis=1, keepdims=True)     # (B, 1)
        # diag(u @ v_neg.T)[i] = sum_k u[i,k] * v_neg[i,k] -> row-wise dot
        diag2 = jnp.sum(u * v_neg, axis=1, keepdims=True)       # (B, 1)

        def softplus(z):
            # stable softplus(z) == log(1 + exp(z)); softplus(-x) == -log(sigmoid(x))
            return jnp.maximum(z, 0.0) + jnp.log(1.0 + jnp.exp(-jnp.abs(z)))

        l1 = softplus(-diag1)   # == -log(sigmoid(diag1))      (loss1 in the module)
        l2 = softplus(diag2)    # == -log(1/(1+exp(diag2)))    (loss2 in the module)

        total = jnp.sum(l1 + l2, axis=0, keepdims=True) * (1.0 / batch)   # (1, 1)
        out_ref[...] = total.astype(jnp.float32)


def skip_gram_loss(emb_weights, x_idx, label_idx, neg_idx):
    """Fused embedding-gather (one-hot MXU) + skip-gram NEG loss, vocab-tiled over the grid."""
    vocab, embed = emb_weights.shape
    batch, ctx = x_idx.shape
    _, neg = neg_idx.shape
    assert batch == embed, "diag(u @ v_pos) in the reference module requires batch == embed_size"
    assert vocab % TV == 0, "vocab must be a multiple of the vocab tile size"
    n_tiles = vocab // TV

    kernel = functools.partial(skip_gram_loss_kernel, batch=batch, ctx=ctx, neg=neg, tv=TV)

    out = pl.pallas_call(
        kernel,
        out_shape=jax.ShapeDtypeStruct((1, 1), jnp.float32),
        grid_spec=pltpu.PrefetchScalarGridSpec(
            num_scalar_prefetch=0,
            grid=(n_tiles,),
            in_specs=[
                # Small integer id tensors: full-array blocks, resident across the grid.
                pl.BlockSpec((batch, 1), lambda v: (0, 0)),
                pl.BlockSpec((batch, ctx), lambda v: (0, 0)),
                pl.BlockSpec((batch, neg), lambda v: (0, 0)),
                # Embedding table streamed tile-by-tile along the vocab axis.
                pl.BlockSpec((TV, embed), lambda v: (v, 0)),
            ],
            out_specs=pl.BlockSpec((1, 1), lambda v: (0, 0)),
            scratch_shapes=[
                pltpu.VMEM((batch, embed), jnp.float32),   # u accumulator
                pltpu.VMEM((batch, embed), jnp.float32),   # v_pos accumulator
                pltpu.VMEM((batch, embed), jnp.float32),   # v_neg accumulator
            ],
        ),
        compiler_params=pltpu.CompilerParams(
            dimension_semantics=("arbitrary",),            # vocab axis is a reduction
        ),
    )(
        label_idx.reshape(batch, 1).astype(jnp.int32),
        x_idx.astype(jnp.int32),
        neg_idx.astype(jnp.int32),
        emb_weights.astype(jnp.float32),
    )
    return out[0, 0]


def reference_loss(emb_weights, x_idx, label_idx, neg_idx):
    """Pure-JAX reference implementing the module's forward exactly."""
    u = emb_weights[label_idx]                     # (B, E)
    v_pos = emb_weights[x_idx].mean(axis=1)        # (B, E)
    v_neg = emb_weights[neg_idx].mean(axis=1)      # (B, E)
    diag1 = jnp.sum(u * v_pos.T, axis=1)           # diag(u @ v_pos)
    diag2 = jnp.sum(u * v_neg, axis=1)             # diag(u @ v_neg.T)
    l1 = -jax.nn.log_sigmoid(diag1)                # -log(sigmoid(diag1))
    l2 = -jax.nn.log_sigmoid(-diag2)               # -log(1/(1+exp(diag2)))
    return l1.mean() + l2.mean()


if __name__ == "__main__":
    key = jax.random.PRNGKey(0)
    k_w, k_x, k_l, k_n = jax.random.split(key, 4)

    # nn.Embedding(vocabulary_size, embed_size) with weight.data.uniform_(-1, 1)
    emb_weights = jax.random.uniform(
        k_w, (VOCAB, EMBED), dtype=jnp.float32, minval=-1.0, maxval=1.0)

    x_idx = jax.random.randint(k_x, (BATCH, CTX), 0, VOCAB, dtype=jnp.int32)    # context ids
    label_idx = jax.random.randint(k_l, (BATCH,), 0, VOCAB, dtype=jnp.int32)    # center ids
    neg_idx = jax.random.randint(k_n, (BATCH, NEG), 0, VOCAB, dtype=jnp.int32)  # negative ids

    loss = jax.jit(skip_gram_loss)(emb_weights, x_idx, label_idx, neg_idx)
    jax.block_until_ready(loss)

    ref = reference_loss(emb_weights, x_idx, label_idx, neg_idx)
    assert loss.shape == () and jnp.isfinite(loss)
    assert jnp.allclose(loss, ref, atol=1e-4, rtol=1e-4), (loss, ref)
    print("KERNEL_OK")
</pallas_src>

<mosaic_0001>
module attributes {stable_mosaic.version = 11 : i64} {
  func.func @skip_gram_loss_kernel(%arg0: i32, %arg1: memref<128x1xi32, #tpu.memory_space<vmem>>, %arg2: memref<128x4xi32, #tpu.memory_space<vmem>>, %arg3: memref<128x5xi32, #tpu.memory_space<vmem>>, %arg4: memref<128x128xf32, #tpu.memory_space<vmem>>, %arg5: memref<1x1xf32, #tpu.memory_space<vmem>>, %arg6: memref<128x128xf32, #tpu.memory_space<vmem>>, %arg7: memref<128x128xf32, #tpu.memory_space<vmem>>, %arg8: memref<128x128xf32, #tpu.memory_space<vmem>>) attributes {dimension_semantics = [#tpu.dimension_semantics<arbitrary>], iteration_bounds = array<i64: 4>, scalar_prefetch = 0 : i64, scratch_operands = 3 : i64, tpu.core_type = #tpu.core_type<tc>, window_params = [{pipeline_mode = #tpu.pipeline_mode<synchronous>, transform_indices = @transform_0, window_bounds = array<i64: 128, 1>}, {pipeline_mode = #tpu.pipeline_mode<synchronous>, transform_indices = @transform_1, window_bounds = array<i64: 128, 4>}, {pipeline_mode = #tpu.pipeline_mode<synchronous>, transform_indices = @transform_2, window_bounds = array<i64: 128, 5>}, {transform_indices = @transform_3, window_bounds = array<i64: 128, 128>}, {pipeline_mode = #tpu.pipeline_mode<synchronous>, transform_indices = @transform_4, window_bounds = array<i64: 1, 1>}]} {
    %c0_i32 = arith.constant 0 : i32
    %0 = arith.cmpi eq, %arg0, %c0_i32 : i32
    %1 = arith.extui %0 : i1 to i32
    %c0_i32_0 = arith.constant 0 : i32
    %2 = arith.cmpi ne, %1, %c0_i32_0 : i32
    scf.if %2 {
      %cst_33 = arith.constant 0.000000e+00 : f32
      %80 = vector.broadcast %cst_33 : f32 to vector<128x128xf32>
      %c0_34 = arith.constant 0 : index
      %c0_35 = arith.constant 0 : index
      %81 = vector.load %arg6[%c0_34, %c0_35] : memref<128x128xf32, #tpu.memory_space<vmem>>, vector<128x128xf32>
      tpu.vector_store %arg6[%c0_34, %c0_35], %80 {strides = array<i32>} : memref<128x128xf32, #tpu.memory_space<vmem>>, vector<128x128xf32>,
      %cst_36 = arith.constant 0.000000e+00 : f32
      %82 = vector.broadcast %cst_36 : f32 to vector<128x128xf32>
      %c0_37 = arith.constant 0 : index
      %c0_38 = arith.constant 0 : index
      %83 = vector.load %arg7[%c0_37, %c0_38] : memref<128x128xf32, #tpu.memory_space<vmem>>, vector<128x128xf32>
      tpu.vector_store %arg7[%c0_37, %c0_38], %82 {strides = array<i32>} : memref<128x128xf32, #tpu.memory_space<vmem>>, vector<128x128xf32>,
      %cst_39 = arith.constant 0.000000e+00 : f32
      %84 = vector.broadcast %cst_39 : f32 to vector<128x128xf32>
      %c0_40 = arith.constant 0 : index
      %c0_41 = arith.constant 0 : index
      %85 = vector.load %arg8[%c0_40, %c0_41] : memref<128x128xf32, #tpu.memory_space<vmem>>, vector<128x128xf32>
      tpu.vector_store %arg8[%c0_40, %c0_41], %84 {strides = array<i32>} : memref<128x128xf32, #tpu.memory_space<vmem>>, vector<128x128xf32>,
    } else {
    }
    %c128_i32 = arith.constant 128 : i32
    %3 = arith.muli %arg0, %c128_i32 : i32
    %4 = tpu.iota {dimensions = array<i32: 1>} : vector<128x128xi32>
    %5 = vector.broadcast %3 : i32 to vector<128x128xi32>
    %6 = arith.addi %5, %4 : vector<128x128xi32>
    %c0 = arith.constant 0 : index
    %c0_1 = arith.constant 0 : index
    %7 = vector.load %arg4[%c0, %c0_1] : memref<128x128xf32, #tpu.memory_space<vmem>>, vector<128x128xf32>
    %c0_2 = arith.constant 0 : index
    %c0_3 = arith.constant 0 : index
    %8 = vector.load %arg1[%c0_2, %c0_3] : memref<128x1xi32, #tpu.memory_space<vmem>>, vector<128x1xi32>
    %9 = vector.broadcast %8 : vector<128x1xi32> to vector<128x128xi32>
    %10 = arith.cmpi eq, %6, %9 : vector<128x128xi32>
    %11 = arith.extui %10 : vector<128x128xi1> to vector<128x128xi32>
    %12 = arith.sitofp %11 : vector<128x128xi32> to vector<128x128xf32>
    %c0_4 = arith.constant 0 : index
    %c0_5 = arith.constant 0 : index
    %13 = vector.load %arg6[%c0_4, %c0_5] : memref<128x128xf32, #tpu.memory_space<vmem>>, vector<128x128xf32>
    %cst = arith.constant dense<0.000000e+00> : vector<128x128xf32>
    %14 = tpu.matmul %12, %7, %cst {dimension_numbers = #tpu.dot_dimension_numbers<[1], [0], [0], [1], [0, 0, 1, 1], [], []>} : vector<128x128xf32>, vector<128x128xf32>, vector<128x128xf32> -> vector<128x128xf32>
    %15 = arith.addf %13, %14 : vector<128x128xf32>
    %c0_6 = arith.constant 0 : index
    %c0_7 = arith.constant 0 : index
    %16 = vector.load %arg6[%c0_6, %c0_7] : memref<128x128xf32, #tpu.memory_space<vmem>>, vector<128x128xf32>
    tpu.vector_store %arg6[%c0_6, %c0_7], %15 {strides = array<i32>} : memref<128x128xf32, #tpu.memory_space<vmem>>, vector<128x128xf32>,
    %c0_8 = arith.constant 0 : index
    %c0_9 = arith.constant 0 : index
    %17 = vector.load %arg2[%c0_8, %c0_9] : memref<128x4xi32, #tpu.memory_space<vmem>>, vector<128x1xi32>
    %18 = vector.broadcast %17 : vector<128x1xi32> to vector<128x128xi32>
    %19 = arith.cmpi eq, %6, %18 : vector<128x128xi32>
    %20 = arith.extui %19 : vector<128x128xi1> to vector<128x128xi32>
    %21 = arith.sitofp %20 : vector<128x128xi32> to vector<128x128xf32>
    %c0_10 = arith.constant 0 : index
    %c1 = arith.constant 1 : index
    %22 = vector.load %arg2[%c0_10, %c1] : memref<128x4xi32, #tpu.memory_space<vmem>>, vector<128x1xi32>
    %23 = vector.broadcast %22 : vector<128x1xi32> to vector<128x128xi32>
    %24 = arith.cmpi eq, %6, %23 : vector<128x128xi32>
    %25 = arith.extui %24 : vector<128x128xi1> to vector<128x128xi32>
    %26 = arith.sitofp %25 : vector<128x128xi32> to vector<128x128xf32>
    %27 = arith.addf %21, %26 : vector<128x128xf32>
    %c0_11 = arith.constant 0 : index
    %c2 = arith.constant 2 : index
    %28 = vector.load %arg2[%c0_11, %c2] : memref<128x4xi32, #tpu.memory_space<vmem>>, vector<128x1xi32>
    %29 = vector.broadcast %28 : vector<128x1xi32> to vector<128x128xi32>
    %30 = arith.cmpi eq, %6, %29 : vector<128x128xi32>
    %31 = arith.extui %30 : vector<128x128xi1> to vector<128x128xi32>
    %32 = arith.sitofp %31 : vector<128x128xi32> to vector<128x128xf32>
    %33 = arith.addf %27, %32 : vector<128x128xf32>
    %c0_12 = arith.constant 0 : index
    %c3 = arith.constant 3 : index
    %34 = vector.load %arg2[%c0_12, %c3] : memref<128x4xi32, #tpu.memory_space<vmem>>, vector<128x1xi32>
    %35 = vector.broadcast %34 : vector<128x1xi32> to vector<128x128xi32>
    %36 = arith.cmpi eq, %6, %35 : vector<128x128xi32>
    %37 = arith.extui %36 : vector<128x128xi1> to vector<128x128xi32>
    %38 = arith.sitofp %37 : vector<128x128xi32> to vector<128x128xf32>
    %39 = arith.addf %33, %38 : vector<128x128xf32>
    %c0_13 = arith.constant 0 : index
    %c0_14 = arith.constant 0 : index
    %40 = vector.load %arg7[%c0_13, %c0_14] : memref<128x128xf32, #tpu.memory_space<vmem>>, vector<128x128xf32>
    %cst_15 = arith.constant dense<0.000000e+00> : vector<128x128xf32>
    %41 = tpu.matmul %39, %7, %cst_15 {dimension_numbers = #tpu.dot_dimension_numbers<[1], [0], [0], [1], [0, 0, 1, 1], [], []>} : vector<128x128xf32>, vector<128x128xf32>, vector<128x128xf32> -> vector<128x128xf32>
    %42 = arith.addf %40, %41 : vector<128x128xf32>
    %c0_16 = arith.constant 0 : index
    %c0_17 = arith.constant 0 : index
    %43 = vector.load %arg7[%c0_16, %c0_17] : memref<128x128xf32, #tpu.memory_space<vmem>>, vector<128x128xf32>
    tpu.vector_store %arg7[%c0_16, %c0_17], %42 {strides = array<i32>} : memref<128x128xf32, #tpu.memory_space<vmem>>, vector<128x128xf32>,
    %c0_18 = arith.constant 0 : index
    %c0_19 = arith.constant 0 : index
    %44 = vector.load %arg3[%c0_18, %c0_19] : memref<128x5xi32, #tpu.memory_space<vmem>>, vector<128x1xi32>
    %45 = vector.broadcast %44 : vector<128x1xi32> to vector<128x128xi32>
    %46 = arith.cmpi eq, %6, %45 : vector<128x128xi32>
    %47 = arith.extui %46 : vector<128x128xi1> to vector<128x128xi32>
    %48 = arith.sitofp %47 : vector<128x128xi32> to vector<128x128xf32>
    %c0_20 = arith.constant 0 : index
    %c1_21 = arith.constant 1 : index
    %49 = vector.load %arg3[%c0_20, %c1_21] : memref<128x5xi32, #tpu.memory_space<vmem>>, vector<128x1xi32>
    %50 = vector.broadcast %49 : vector<128x1xi32> to vector<128x128xi32>
    %51 = arith.cmpi eq, %6, %50 : vector<128x128xi32>
    %52 = arith.extui %51 : vector<128x128xi1> to vector<128x128xi32>
    %53 = arith.sitofp %52 : vector<128x128xi32> to vector<128x128xf32>
    %54 = arith.addf %48, %53 : vector<128x128xf32>
    %c0_22 = arith.constant 0 : index
    %c2_23 = arith.constant 2 : index
    %55 = vector.load %arg3[%c0_22, %c2_23] : memref<128x5xi32, #tpu.memory_space<vmem>>, vector<128x1xi32>
    %56 = vector.broadcast %55 : vector<128x1xi32> to vector<128x128xi32>
    %57 = arith.cmpi eq, %6, %56 : vector<128x128xi32>
    %58 = arith.extui %57 : vector<128x128xi1> to vector<128x128xi32>
    %59 = arith.sitofp %58 : vector<128x128xi32> to vector<128x128xf32>
    %60 = arith.addf %54, %59 : vector<128x128xf32>
    %c0_24 = arith.constant 0 : index
    %c3_25 = arith.constant 3 : index
    %61 = vector.load %arg3[%c0_24, %c3_25] : memref<128x5xi32, #tpu.memory_space<vmem>>, vector<128x1xi32>
    %62 = vector.broadcast %61 : vector<128x1xi32> to vector<128x128xi32>
    %63 = arith.cmpi eq, %6, %62 : vector<128x128xi32>
    %64 = arith.extui %63 : vector<128x128xi1> to vector<128x128xi32>
    %65 = arith.sitofp %64 : vector<128x128xi32> to vector<128x128xf32>
    %66 = arith.addf %60, %65 : vector<128x128xf32>
    %c0_26 = arith.constant 0 : index
    %c4 = arith.constant 4 : index
    %67 = vector.load %arg3[%c0_26, %c4] : memref<128x5xi32, #tpu.memory_space<vmem>>, vector<128x1xi32>
    %68 = vector.broadcast %67 : vector<128x1xi32> to vector<128x128xi32>
    %69 = arith.cmpi eq, %6, %68 : vector<128x128xi32>
    %70 = arith.extui %69 : vector<128x128xi1> to vector<128x128xi32>
    %71 = arith.sitofp %70 : vector<128x128xi32> to vector<128x128xf32>
    %72 = arith.addf %66, %71 : vector<128x128xf32>
    %c0_27 = arith.constant 0 : index
    %c0_28 = arith.constant 0 : index
    %73 = vector.load %arg8[%c0_27, %c0_28] : memref<128x128xf32, #tpu.memory_space<vmem>>, vector<128x128xf32>
    %cst_29 = arith.constant dense<0.000000e+00> : vector<128x128xf32>
    %74 = tpu.matmul %72, %7, %cst_29 {dimension_numbers = #tpu.dot_dimension_numbers<[1], [0], [0], [1], [0, 0, 1, 1], [], []>} : vector<128x128xf32>, vector<128x128xf32>, vector<128x128xf32> -> vector<128x128xf32>
    %75 = arith.addf %73, %74 : vector<128x128xf32>
    %c0_30 = arith.constant 0 : index
    %c0_31 = arith.constant 0 : index
    %76 = vector.load %arg8[%c0_30, %c0_31] : memref<128x128xf32, #tpu.memory_space<vmem>>, vector<128x128xf32>
    tpu.vector_store %arg8[%c0_30, %c0_31], %75 {strides = array<i32>} : memref<128x128xf32, #tpu.memory_space<vmem>>, vector<128x128xf32>,
    %c3_i32 = arith.constant 3 : i32
    %77 = arith.cmpi eq, %arg0, %c3_i32 : i32
    %78 = arith.extui %77 : i1 to i32
    %c0_i32_32 = arith.constant 0 : i32
    %79 = arith.cmpi ne, %78, %c0_i32_32 : i32
    scf.if %79 {
      %c0_33 = arith.constant 0 : index
      %c0_34 = arith.constant 0 : index
      %80 = vector.load %arg6[%c0_33, %c0_34] : memref<128x128xf32, #tpu.memory_space<vmem>>, vector<128x128xf32>
      %c0_35 = arith.constant 0 : index
      %c0_36 = arith.constant 0 : index
      %81 = vector.load %arg7[%c0_35, %c0_36] : memref<128x128xf32, #tpu.memory_space<vmem>>, vector<128x128xf32>
      %82 = tpu.transpose %81, [1, 0] : vector<128x128xf32> -> vector<128x128xf32>
      %cst_37 = arith.constant 2.500000e-01 : f32
      %83 = vector.broadcast %cst_37 : f32 to vector<128x128xf32>
      %84 = arith.mulf %82, %83 : vector<128x128xf32>
      %c0_38 = arith.constant 0 : index
      %c0_39 = arith.constant 0 : index
      %85 = vector.load %arg8[%c0_38, %c0_39] : memref<128x128xf32, #tpu.memory_space<vmem>>, vector<128x128xf32>
      %cst_40 = arith.constant 2.000000e-01 : f32
      %86 = vector.broadcast %cst_40 : f32 to vector<128x128xf32>
      %87 = arith.mulf %85, %86 : vector<128x128xf32>
      %88 = arith.mulf %80, %84 : vector<128x128xf32>
      %cst_41 = arith.constant dense<0.000000e+00> : vector<128xf32>
      %89 = vector.multi_reduction <add>, %88, %cst_41 [1] : vector<128x128xf32> to vector<128xf32>
      %90 = vector.shape_cast %89 : vector<128xf32> to vector<128x1xf32>
      %91 = arith.mulf %80, %87 : vector<128x128xf32>
      %cst_42 = arith.constant dense<0.000000e+00> : vector<128xf32>
      %92 = vector.multi_reduction <add>, %91, %cst_42 [1] : vector<128x128xf32> to vector<128xf32>
      %93 = vector.shape_cast %92 : vector<128xf32> to vector<128x1xf32>
      %cst_43 = arith.constant 0.000000e+00 : f32
      %94 = vector.broadcast %cst_43 : f32 to vector<128x1xf32>
      %95 = arith.subf %94, %90 : vector<128x1xf32>
      %cst_44 = arith.constant 0.000000e+00 : f32
      %96 = vector.broadcast %cst_44 : f32 to vector<128x1xf32>
      %97 = arith.maximumf %95, %96 : vector<128x1xf32>
      %98 = math.absf %95 : vector<128x1xf32>
      %cst_45 = arith.constant 0.000000e+00 : f32
      %99 = vector.broadcast %cst_45 : f32 to vector<128x1xf32>
      %100 = arith.subf %99, %98 : vector<128x1xf32>
      %101 = math.exp %100 : vector<128x1xf32>
      %cst_46 = arith.constant 1.000000e+00 : f32
      %102 = vector.broadcast %cst_46 : f32 to vector<128x1xf32>
      %103 = arith.addf %102, %101 : vector<128x1xf32>
      %104 = math.log %103 : vector<128x1xf32>
      %105 = arith.addf %97, %104 : vector<128x1xf32>
      %cst_47 = arith.constant 0.000000e+00 : f32
      %106 = vector.broadcast %cst_47 : f32 to vector<128x1xf32>
      %107 = arith.maximumf %93, %106 : vector<128x1xf32>
      %108 = math.absf %93 : vector<128x1xf32>
      %cst_48 = arith.constant 0.000000e+00 : f32
      %109 = vector.broadcast %cst_48 : f32 to vector<128x1xf32>
      %110 = arith.subf %109, %108 : vector<128x1xf32>
      %111 = math.exp %110 : vector<128x1xf32>
      %cst_49 = arith.constant 1.000000e+00 : f32
      %112 = vector.broadcast %cst_49 : f32 to vector<128x1xf32>
      %113 = arith.addf %112, %111 : vector<128x1xf32>
      %114 = math.log %113 : vector<128x1xf32>
      %115 = arith.addf %107, %114 : vector<128x1xf32>
      %116 = arith.addf %105, %115 : vector<128x1xf32>
      %cst_50 = arith.constant dense<0.000000e+00> : vector<1xf32>
      %117 = vector.multi_reduction <add>, %116, %cst_50 [0] : vector<128x1xf32> to vector<1xf32>
      %118 = vector.shape_cast %117 : vector<1xf32> to vector<1x1xf32>
      %cst_51 = arith.constant 7.812500e-03 : f32
      %119 = vector.broadcast %cst_51 : f32 to vector<1x1xf32>
      %120 = arith.mulf %118, %119 : vector<1x1xf32>
      %c0_52 = arith.constant 0 : index
      %c0_53 = arith.constant 0 : index
      %121 = vector.load %arg5[%c0_52, %c0_53] : memref<1x1xf32, #tpu.memory_space<vmem>>, vector<1x1xf32>
      tpu.vector_store %arg5[%c0_52, %c0_53], %120 {strides = array<i32>} : memref<1x1xf32, #tpu.memory_space<vmem>>, vector<1x1xf32>,
    } else {
    }
    return
  }
  func.func @transform_0(%arg0: i32) -> (i32, i32) {
    %c0_i32 = arith.constant 0 : i32
    %c0_i32_0 = arith.constant 0 : i32
    %c0_i32_1 = arith.constant 0 : i32
    return %c0_i32, %c0_i32_0 : i32, i32
  }
  func.func @transform_1(%arg0: i32) -> (i32, i32) {
    %c0_i32 = arith.constant 0 : i32
    %c0_i32_0 = arith.constant 0 : i32
    %c0_i32_1 = arith.constant 0 : i32
    return %c0_i32, %c0_i32_0 : i32, i32
  }
  func.func @transform_2(%arg0: i32) -> (i32, i32) {
    %c0_i32 = arith.constant 0 : i32
    %c0_i32_0 = arith.constant 0 : i32
    %c0_i32_1 = arith.constant 0 : i32
    return %c0_i32, %c0_i32_0 : i32, i32
  }
  func.func @transform_3(%arg0: i32) -> (i32, i32) {
    %c0_i32 = arith.constant 0 : i32
    %c0_i32_0 = arith.constant 0 : i32
    return %arg0, %c0_i32 : i32, i32
  }
  func.func @transform_4(%arg0: i32) -> (i32, i32) {
    %c0_i32 = arith.constant 0 : i32
    %c0_i32_0 = arith.constant 0 : i32
    %c0_i32_1 = arith.constant 0 : i32
    return %c0_i32, %c0_i32_0 : i32, i32
  }
}

</mosaic_0001>

<llo_original>
// kernel: skip_gram_loss.1
$region0: #{skip_gram_loss.1}
  #allocation0 [shape = 'u32[]', space=smem, size = 0x4, offset = 0x4, fixed_abs, tag = 'smem constant byte address 0x4 - core index']
  #allocation1 [shape = 'u32[72,128]{1,0:T(1,128)}', space=vmem, size = 0x9000, scoped, tag = 'internal scratch']
  #allocation2 [shape = 'f32[128,128]{1,0:T(8,128)}', space=vmem, size = 0x10000, scoped, tag = 'scratch operand']
  #allocation3 [shape = 'f32[128,128]{1,0:T(8,128)}', space=vmem, size = 0x10000, scoped, tag = 'scratch operand']
  #allocation4 [shape = 'f32[128,128]{1,0:T(8,128)}', space=vmem, size = 0x10000, scoped, tag = 'scratch operand']
  %s0 = inlined_call_operand.vmem [shape: s32[128,1], index: 0, kind: input, shape index: {}]
  %s1 = inlined_call_operand.vmem [shape: s32[128,4], index: 1, kind: input, shape index: {}]
  %s2 = inlined_call_operand.vmem [shape: s32[128,5], index: 2, kind: input, shape index: {}]
  %s3 = inlined_call_operand.hbm [shape: f32[512,128], index: 3, kind: input, shape index: {}]
  %s4 = inlined_call_operand.hbm [shape: f32[1,1], index: 4, kind: output, shape index: {}]
  %s5 = sld [smem:[#allocation0]]
  $region61: #{skip_gram_loss.1} parent=0
    _
  %s7 = ssub.s32 1, %s5
  %s8 = scalar_select 0, %s7, %s5
  $region1: #{skip_gram_loss.1} parent=0
    #allocation5 [shape = 'u8[131072]{0}', space=vmem, size = 0x20000, scoped, tag = 'input window, operand 3']
    #allocation6 [shape = 's32[2]{0}', space=sflag, size = 0x8, scoped, tag = 'scoped memory for skip_gram_loss.1']
    #allocation7 [shape = 's32[2]{0}', space=sflag, size = 0x8, scoped, tag = 'scoped memory for skip_gram_loss.1']
    #allocation8 [shape = 'u8[512]{0}', space=vmem, size = 0x400, scoped, tag = 'output window, operand 0, single buffered']
    %9 = vsyncpa [#allocation6], 0
    %s10 = scalar_lea.sflag [#allocation6], 1
    %11 = vsyncpa %s10, 0
    %12 = vsyncpa [#allocation7], 0
    loop: start=0, step=1, limit=6
    $region2: #{skip_gram_loss.1} parent=1 // loop_pre_header
      _
    $region3: #{skip_gram_loss.1} parent=1 // loop_header
      %s14 = sphi 0, %s18
      %p15 = scmp.ge.s32.totalorder %s14, 6
      %s22 = sphi 0, %s22
      %s24 = sphi 0, %s22
      %s25 = sphi 0, %s24
      %s39 = sphi 0, %s25
      %s43 = sphi 0, %s43
      %s45 = sphi 0, %s43
      %s46 = sphi 0, %s45
      %s60 = sphi 0, %s46
      %s64 = sphi 0, %s64
      %s66 = sphi 0, %s64
      %s67 = sphi 0, %s66
      %s81 = sphi 0, %s67
      %s87 = sphi 0, %s89
      %s90 = sphi 0, %s87
      %s91 = sphi 0, %s90
      %s107 = sphi 0, %s91
      %s111 = sphi 0, %s111
      %s113 = sphi 0, %s111
      %s114 = sphi 0, %s113
      %s128 = sphi 0, %s114
    $region4: #{skip_gram_loss.1} parent=1 // loop_header_branch
      %17 = sbr.rel (%p15) target = $region8
    $region5: #{skip_gram_loss.1} parent=1 // loop_body
      %s19 = ssub.s32 %s14, 1
      %s20 = ssub.s32 %s14, 2
      %s21 = sadd.s32 %s14, 1
      %s23 = sadd.s32 %s22, 1
      %p26 = scmp.eq.s32.totalorder %s14, 3
      %p27 = scmp.ne.s32.totalorder %s22, %s24
      %p28 = scmp.eq.s32.totalorder %s14, 0
      %p29 = por %p27, %p28
      %p30 = scmp.ne.s32.totalorder %s22, %s24
      %p31 = scmp.eq.s32.totalorder %s19, 3
      %p32 = por %p30, %p31
      %p33 = scmp.ne.s32.totalorder %s24, %s25
      %p34 = scmp.eq.s32.totalorder %s19, 0
      %p35 = por %p33, %p34
      %p36 = scmp.ne.s32.totalorder %s24, %s25
      %p37 = scmp.eq.s32.totalorder %s20, 3
      %p38 = por %p36, %p37
      %p40 = scmp.ne.s32.totalorder %s25, %s39
      %p41 = scmp.eq.s32.totalorder %s20, 0
      %p42 = por %p40, %p41
      %s44 = sadd.s32 %s43, 1
      %p47 = scmp.eq.s32.totalorder %s14, 3
      %p48 = scmp.ne.s32.totalorder %s43, %s45
      %p49 = scmp.eq.s32.totalorder %s14, 0
      %p50 = por %p48, %p49
      %p51 = scmp.ne.s32.totalorder %s43, %s45
      %p52 = scmp.eq.s32.totalorder %s19, 3
      %p53 = por %p51, %p52
      %p54 = scmp.ne.s32.totalorder %s45, %s46
      %p55 = scmp.eq.s32.totalorder %s19, 0
      %p56 = por %p54, %p55
      %p57 = scmp.ne.s32.totalorder %s45, %s46
      %p58 = scmp.eq.s32.totalorder %s20, 3
      %p59 = por %p57, %p58
      %p61 = scmp.ne.s32.totalorder %s46, %s60
      %p62 = scmp.eq.s32.totalorder %s20, 0
      %p63 = por %p61, %p62
      %s65 = sadd.s32 %s64, 1
      %p68 = scmp.eq.s32.totalorder %s14, 3
      %p69 = scmp.ne.s32.totalorder %s64, %s66
      %p70 = scmp.eq.s32.totalorder %s14, 0
      %p71 = por %p69, %p70
      %p72 = scmp.ne.s32.totalorder %s64, %s66
      %p73 = scmp.eq.s32.totalorder %s19, 3
      %p74 = por %p72, %p73
      %p75 = scmp.ne.s32.totalorder %s66, %s67
      %p76 = scmp.eq.s32.totalorder %s19, 0
      %p77 = por %p75, %p76
      %p78 = scmp.ne.s32.totalorder %s66, %s67
      %p79 = scmp.eq.s32.totalorder %s20, 3
      %p80 = por %p78, %p79
      %p82 = scmp.ne.s32.totalorder %s67, %s81
      %p83 = scmp.eq.s32.totalorder %s20, 0
      %p84 = por %p82, %p83
      %s85 = ssub.s32 %s14, %s21
      %p86 = scmp.eq.s32.totalorder %s85, 0
      %s88 = sadd.s32 %s87, 1
      %s89 = scalar_select %p86, %s87, %s88
      %p92 = pneg %p86
      %p93 = scmp.eq.s32.totalorder %s14, 3
      %p94 = por %p92, %p93
      %p95 = scmp.ne.s32.totalorder %s87, %s90
      %p96 = scmp.eq.s32.totalorder %s14, 0
      %p97 = por %p95, %p96
      %p98 = scmp.ne.s32.totalorder %s87, %s90
      %p99 = scmp.eq.s32.totalorder %s19, 3
      %p100 = por %p98, %p99
      %p101 = scmp.ne.s32.totalorder %s90, %s91
      %p102 = scmp.eq.s32.totalorder %s19, 0
      %p103 = por %p101, %p102
      %p104 = scmp.ne.s32.totalorder %s90, %s91
      %p105 = scmp.eq.s32.totalorder %s20, 3
      %p106 = por %p104, %p105
      %p108 = scmp.ne.s32.totalorder %s91, %s107
      %p109 = scmp.eq.s32.totalorder %s20, 0
      %p110 = por %p108, %p109
      %s112 = sadd.s32 %s111, 1
      %p115 = scmp.eq.s32.totalorder %s14, 3
      %p116 = scmp.ne.s32.totalorder %s111, %s113
      %p117 = scmp.eq.s32.totalorder %s14, 0
      %p118 = por %p116, %p117
      %p119 = scmp.ne.s32.totalorder %s111, %s113
      %p120 = scmp.eq.s32.totalorder %s19, 3
      %p121 = por %p119, %p120
      %p122 = scmp.ne.s32.totalorder %s113, %s114
      %p123 = scmp.eq.s32.totalorder %s19, 0
      %p124 = por %p122, %p123
      %p125 = scmp.ne.s32.totalorder %s113, %s114
      %p126 = scmp.eq.s32.totalorder %s20, 3
      %p127 = por %p125, %p126
      %p129 = scmp.ne.s32.totalorder %s114, %s128
      %p130 = scmp.eq.s32.totalorder %s20, 0
      %p131 = por %p129, %p130
      %p132 = scmp.le.s32.totalorder 1, %s14
      %p133 = scmp.lt.s32.totalorder %s14, 5
      %p134 = pnand %p132, %p133
      %p135 = pneg %p134
      // Predicated region
      $region9: #{skip_gram_loss.1} parent=5 // pred_check
        _
      $region10: #{skip_gram_loss.1} parent=5 // pred_check_branch
        %137 = sbr.rel (%p134) target = $region12
      $region11: #{skip_gram_loss.1} parent=5 // pred_region
        %s138 = ssub.s32 %s14, 1
        // Predicated region
        $region13: #{skip_gram_loss.1} parent=11 // pred_check
          %p139 = pneg %p35
        $region14: #{skip_gram_loss.1} parent=11 // pred_check_branch
          %141 = sbr.rel (%p139) target = $region16
        $region15: #{skip_gram_loss.1} parent=11 // pred_region
          _
        $region16: #{skip_gram_loss.1} parent=11 // pred_fallthru
          _
        // Predicated region
        $region17: #{skip_gram_loss.1} parent=11 // pred_check
          %p142 = pneg %p56
        $region18: #{skip_gram_loss.1} parent=11 // pred_check_branch
          %144 = sbr.rel (%p142) target = $region20
        $region19: #{skip_gram_loss.1} parent=11 // pred_region
          _
        $region20: #{skip_gram_loss.1} parent=11 // pred_fallthru
          _
        // Predicated region
        $region21: #{skip_gram_loss.1} parent=11 // pred_check
          %p145 = pneg %p77
        $region22: #{skip_gram_loss.1} parent=11 // pred_check_branch
          %147 = sbr.rel (%p145) target = $region24
        $region23: #{skip_gram_loss.1} parent=11 // pred_region
          _
        $region24: #{skip_gram_loss.1} parent=11 // pred_fallthru
          _
      $region12: #{skip_gram_loss.1} parent=5 // pred_fallthru
        _
      %p148 = scmp.lt.s32.totalorder %s14, 4
      // Predicated region
      $region25: #{skip_gram_loss.1} parent=5 // pred_check
        %p149 = pneg %p148
      $region26: #{skip_gram_loss.1} parent=5 // pred_check_branch
        %151 = sbr.rel (%p149) target = $region28
      $region27: #{skip_gram_loss.1} parent=5 // pred_region
        // Predicated region
        $region29: #{skip_gram_loss.1} parent=27 // pred_check
          %p152 = pneg %p97
        $region30: #{skip_gram_loss.1} parent=27 // pred_check_branch
          %154 = sbr.rel (%p152) target = $region32
        $region31: #{skip_gram_loss.1} parent=27 // pred_region
          %s155 = sand.u32 %s87, 1
          %s156 = scalar_lea.sflag [#allocation6], %s155
          %s157 = sand.u32 %s87, 1
          %s158 = smul.addr %s157, 128
          %s159 = scalar_lea.vmem [#allocation5], %s158
          %s160 = smul.u32 16, %s14
          %162 = vsyncadd %s156, 0
          %s163 = smul.addr %s160, 8
          %s164 = scalar_lea.hbm %s3, %s163
          %s165 = sshll.u32 %s164, 4
          %s166 = int_to_ptr.hbm [resolvable:$true] %s165
          %s167 = sshll.u32 %s159, 4
          %s168 = int_to_ptr.vmem [resolvable:$true] %s167
          %173 = dma.hbm_to_vmem [thread:$0]  %s166, 2048, %s168, %s156, 128, 128, 8
        $region32: #{skip_gram_loss.1} parent=27 // pred_fallthru
          _
      $region28: #{skip_gram_loss.1} parent=5 // pred_fallthru
        _
      %p174 = scmp.le.s32.totalorder 1, %s14
      %p175 = scmp.lt.s32.totalorder %s14, 5
      %p176 = pnand %p174, %p175
      %p177 = pneg %p176
      // Predicated region
      $region33: #{skip_gram_loss.1} parent=5 // pred_check
        _
      $region34: #{skip_gram_loss.1} parent=5 // pred_check_branch
        %179 = sbr.rel (%p176) target = $region36
      $region35: #{skip_gram_loss.1} parent=5 // pred_region
        %s180 = ssub.s32 %s14, 1
        %s181 = sand.u32 %s90, 1
        %s182 = scalar_lea.sflag [#allocation6], %s181
        %s183 = sand.u32 %s90, 1
        %s184 = smul.addr %s183, 128
        %s185 = scalar_lea.vmem [#allocation5], %s184
        // Predicated region
        $region37: #{skip_gram_loss.1} parent=35 // pred_check
          %p186 = pneg %p103
        $region38: #{skip_gram_loss.1} parent=35 // pred_check_branch
          %188 = sbr.rel (%p186) target = $region40
        $region39: #{skip_gram_loss.1} parent=35 // pred_region
          %190 = dma.done %s182, 2048
        $region40: #{skip_gram_loss.1} parent=35 // pred_fallthru
          _
        %p191 = pneg %p35
        %p192 = pneg %p32
        %p193 = pneg %p56
        %p194 = pneg %p53
        %p195 = pneg %p77
        %p196 = pneg %p74
        %s197 = sand.u32 %s90, 1
        %s198 = scalar_lea.sflag [#allocation6], %s197
        %s199 = sand.u32 %s90, 1
        %s200 = smul.addr %s199, 128
        %s201 = scalar_lea.vmem [#allocation5], %s200
        %p202 = pneg %p103
        %p203 = pneg %p100
        %p204 = pneg %p124
        %p205 = pneg %p121
        %s206 = smul.u32 16, %s19
        %p207 = scmp.eq.s32.totalorder %s19, 0
        // Predicated region
        $region41: #{skip_gram_loss.1} parent=35 // pred_check
          %p208 = pneg %p207
        $region42: #{skip_gram_loss.1} parent=35 // pred_check_branch
          %210 = sbr.rel (%p208) target = $region44
        $region43: #{skip_gram_loss.1} parent=35 // pred_region
          %211 = vst [vmem:[#allocation2] sm:$0xff] 0.0
          %212 = vst [vmem:[#allocation2 + $0x8] sm:$0xff] 0.0
          %213 = vst [vmem:[#allocation2 + $0x10] sm:$0xff] 0.0
          %214 = vst [vmem:[#allocation2 + $0x18] sm:$0xff] 0.0
          %215 = vst [vmem:[#allocation2 + $0x20] sm:$0xff] 0.0
          %216 = vst [vmem:[#allocation2 + $0x28] sm:$0xff] 0.0
          %217 = vst [vmem:[#allocation2 + $0x30] sm:$0xff] 0.0
          %218 = vst [vmem:[#allocation2 + $0x38] sm:$0xff] 0.0
          %219 = vst [vmem:[#allocation2 + $0x40] sm:$0xff] 0.0
          %220 = vst [vmem:[#allocation2 + $0x48] sm:$0xff] 0.0
          %221 = vst [vmem:[#allocation2 + $0x50] sm:$0xff] 0.0
          %222 = vst [vmem:[#allocation2 + $0x58] sm:$0xff] 0.0
          %223 = vst [vmem:[#allocation2 + $0x60] sm:$0xff] 0.0
          %224 = vst [vmem:[#allocation2 + $0x68] sm:$0xff] 0.0
          %225 = vst [vmem:[#allocation2 + $0x70] sm:$0xff] 0.0
          %226 = vst [vmem:[#allocation2 + $0x78] sm:$0xff] 0.0
          %227 = vst [vmem:[#allocation3] sm:$0xff] 0.0
          %228 = vst [vmem:[#allocation3 + $0x8] sm:$0xff] 0.0
          %229 = vst [vmem:[#allocation3 + $0x10] sm:$0xff] 0.0
          %230 = vst [vmem:[#allocation3 + $0x18] sm:$0xff] 0.0
          %231 = vst [vmem:[#allocation3 + $0x20] sm:$0xff] 0.0
          %232 = vst [vmem:[#allocation3 + $0x28] sm:$0xff] 0.0
          %233 = vst [vmem:[#allocation3 + $0x30] sm:$0xff] 0.0
          %234 = vst [vmem:[#allocation3 + $0x38] sm:$0xff] 0.0
          %235 = vst [vmem:[#allocation3 + $0x40] sm:$0xff] 0.0
          %236 = vst [vmem:[#allocation3 + $0x48] sm:$0xff] 0.0
          %237 = vst [vmem:[#allocation3 + $0x50] sm:$0xff] 0.0
          %238 = vst [vmem:[#allocation3 + $0x58] sm:$0xff] 0.0
          %239 = vst [vmem:[#allocation3 + $0x60] sm:$0xff] 0.0
          %240 = vst [vmem:[#allocation3 + $0x68] sm:$0xff] 0.0
          %241 = vst [vmem:[#allocation3 + $0x70] sm:$0xff] 0.0
          %242 = vst [vmem:[#allocation3 + $0x78] sm:$0xff] 0.0
          %243 = vst [vmem:[#allocation4] sm:$0xff] 0.0
          %244 = vst [vmem:[#allocation4 + $0x8] sm:$0xff] 0.0
          %245 = vst [vmem:[#allocation4 + $0x10] sm:$0xff] 0.0
          %246 = vst [vmem:[#allocation4 + $0x18] sm:$0xff] 0.0
          %247 = vst [vmem:[#allocation4 + $0x20] sm:$0xff] 0.0
          %248 = vst [vmem:[#allocation4 + $0x28] sm:$0xff] 0.0
          %249 = vst [vmem:[#allocation4 + $0x30] sm:$0xff] 0.0
          %250 = vst [vmem:[#allocation4 + $0x38] sm:$0xff] 0.0
          %251 = vst [vmem:[#allocation4 + $0x40] sm:$0xff] 0.0
          %252 = vst [vmem:[#allocation4 + $0x48] sm:$0xff] 0.0
          %253 = vst [vmem:[#allocation4 + $0x50] sm:$0xff] 0.0
          %254 = vst [vmem:[#allocation4 + $0x58] sm:$0xff] 0.0
          %255 = vst [vmem:[#allocation4 + $0x60] sm:$0xff] 0.0
          %256 = vst [vmem:[#allocation4 + $0x68] sm:$0xff] 0.0
          %257 = vst [vmem:[#allocation4 + $0x70] sm:$0xff] 0.0
          %258 = vst [vmem:[#allocation4 + $0x78] sm:$0xff] 0.0
        $region44: #{skip_gram_loss.1} parent=35 // pred_fallthru
          _
        %s259 = smul.u32 %s19, 128
        %v260 = vlaneseq
        %v261 = vand.u32 %v260, 127
        %v262 = vstv %s259
        %v263 = vadd.s32 %v262, %v261
        %v264 = vld [vmem:[%s185] sm:$0xff]
        %v265 = vld [vmem:[%s185 + $0x8] sm:$0xff]
        %v266 = vld [vmem:[%s185 + $0x10] sm:$0xff]
        %v267 = vld [vmem:[%s185 + $0x18] sm:$0xff]
        %v268 = vld [vmem:[%s185 + $0x20] sm:$0xff]
        %v269 = vld [vmem:[%s185 + $0x28] sm:$0xff]
        %v270 = vld [vmem:[%s185 + $0x30] sm:$0xff]
        %v271 = vld [vmem:[%s185 + $0x38] sm:$0xff]
        %v272 = vld [vmem:[%s185 + $0x40] sm:$0xff]
        %v273 = vld [vmem:[%s185 + $0x48] sm:$0xff]
        %v274 = vld [vmem:[%s185 + $0x50] sm:$0xff]
        %v275 = vld [vmem:[%s185 + $0x58] sm:$0xff]
        %v276 = vld [vmem:[%s185 + $0x60] sm:$0xff]
        %v277 = vld [vmem:[%s185 + $0x68] sm:$0xff]
        %v278 = vld [vmem:[%s185 + $0x70] sm:$0xff]
        %v279 = vld [vmem:[%s185 + $0x78] sm:$0xff]
        %v280 = vld [vmem:[%s0] sm:$0xff]
        %v281 = vld [vmem:[%s0 + $0x8] sm:$0xff]
        %v282 = vld [vmem:[%s0 + $0x10] sm:$0xff]
        %v283 = vld [vmem:[%s0 + $0x18] sm:$0xff]
        %v284 = vld [vmem:[%s0 + $0x20] sm:$0xff]
        %v285 = vld [vmem:[%s0 + $0x28] sm:$0xff]
        %v286 = vld [vmem:[%s0 + $0x30] sm:$0xff]
        %v287 = vld [vmem:[%s0 + $0x38] sm:$0xff]
        %v288 = vld [vmem:[%s0 + $0x40] sm:$0xff]
        %v289 = vld [vmem:[%s0 + $0x48] sm:$0xff]
        %v290 = vld [vmem:[%s0 + $0x50] sm:$0xff]
        %v291 = vld [vmem:[%s0 + $0x58] sm:$0xff]
        %v292 = vld [vmem:[%s0 + $0x60] sm:$0xff]
        %v293 = vld [vmem:[%s0 + $0x68] sm:$0xff]
        %v294 = vld [vmem:[%s0 + $0x70] sm:$0xff]
        %v295 = vld [vmem:[%s0 + $0x78] sm:$0xff]
        %296 = vset.pattern.permute.xlu0 0
        %297 = vperm.xlu0 %296, %v280
        %v298 = vpop.permute.xlu0 %297
        %299 = vset.pattern.permute.xlu0 0
        %300 = vperm.xlu0 %299, %v281
        %v301 = vpop.permute.xlu0 %300
        %302 = vset.pattern.permute.xlu0 0
        %303 = vperm.xlu0 %302, %v282
        %v304 = vpop.permute.xlu0 %303
        %305 = vset.pattern.permute.xlu0 0
        %306 = vperm.xlu0 %305, %v283
        %v307 = vpop.permute.xlu0 %306
        %308 = vset.pattern.permute.xlu0 0
        %309 = vperm.xlu0 %308, %v284
        %v310 = vpop.permute.xlu0 %309
        %311 = vset.pattern.permute.xlu0 0
        %312 = vperm.xlu0 %311, %v285
        %v313 = vpop.permute.xlu0 %312
        %314 = vset.pattern.permute.xlu0 0
        %315 = vperm.xlu0 %314, %v286
        %v316 = vpop.permute.xlu0 %315
        %317 = vset.pattern.permute.xlu0 0
        %318 = vperm.xlu0 %317, %v287
        %v319 = vpop.permute.xlu0 %318
        %320 = vset.pattern.permute.xlu0 0
        %321 = vperm.xlu0 %320, %v288
        %v322 = vpop.permute.xlu0 %321
        %323 = vset.pattern.permute.xlu0 0
        %324 = vperm.xlu0 %323, %v289
        %v325 = vpop.permute.xlu0 %324
        %326 = vset.pattern.permute.xlu0 0
        %327 = vperm.xlu0 %326, %v290
        %v328 = vpop.permute.xlu0 %327
        %329 = vset.pattern.permute.xlu0 0
        %330 = vperm.xlu0 %329, %v291
        %v331 = vpop.permute.xlu0 %330
        %332 = vset.pattern.permute.xlu0 0
        %333 = vperm.xlu0 %332, %v292
        %v334 = vpop.permute.xlu0 %333
        %335 = vset.pattern.permute.xlu0 0
        %336 = vperm.xlu0 %335, %v293
        %v337 = vpop.permute.xlu0 %336
        %338 = vset.pattern.permute.xlu0 0
        %339 = vperm.xlu0 %338, %v294
        %v340 = vpop.permute.xlu0 %339
        %341 = vset.pattern.permute.xlu0 0
        %342 = vperm.xlu0 %341, %v295
        %v343 = vpop.permute.xlu0 %342
        %vm344 = vcmp.eq.s32.totalorder %v263, %v298
        %vm345 = vcmp.eq.s32.totalorder %v263, %v301
        %vm346 = vcmp.eq.s32.totalorder %v263, %v304
        %vm347 = vcmp.eq.s32.totalorder %v263, %v307
        %vm348 = vcmp.eq.s32.totalorder %v263, %v310
        %vm349 = vcmp.eq.s32.totalorder %v263, %v313
        %vm350 = vcmp.eq.s32.totalorder %v263, %v316
        %vm351 = vcmp.eq.s32.totalorder %v263, %v319
        %vm352 = vcmp.eq.s32.totalorder %v263, %v322
        %vm353 = vcmp.eq.s32.totalorder %v263, %v325
        %vm354 = vcmp.eq.s32.totalorder %v263, %v328
        %vm355 = vcmp.eq.s32.totalorder %v263, %v331
        %vm356 = vcmp.eq.s32.totalorder %v263, %v334
        %vm357 = vcmp.eq.s32.totalorder %v263, %v337
        %vm358 = vcmp.eq.s32.totalorder %v263, %v340
        %vm359 = vcmp.eq.s32.totalorder %v263, %v343
        %v360 = vsel %vm344, 1, 0
        %v361 = vsel %vm345, 1, 0
        %v362 = vsel %vm346, 1, 0
        %v363 = vsel %vm347, 1, 0
        %v364 = vsel %vm348, 1, 0
        %v365 = vsel %vm349, 1, 0
        %v366 = vsel %vm350, 1, 0
        %v367 = vsel %vm351, 1, 0
        %v368 = vsel %vm352, 1, 0
        %v369 = vsel %vm353, 1, 0
        %v370 = vsel %vm354, 1, 0
        %v371 = vsel %vm355, 1, 0
        %v372 = vsel %vm356, 1, 0
        %v373 = vsel %vm357, 1, 0
        %v374 = vsel %vm358, 1, 0
        %v375 = vsel %vm359, 1, 0
        %v376 = vcvt.s32.f32 %v360
        %v377 = vcvt.s32.f32 %v361
        %v378 = vcvt.s32.f32 %v362
        %v379 = vcvt.s32.f32 %v363
        %v380 = vcvt.s32.f32 %v364
        %v381 = vcvt.s32.f32 %v365
        %v382 = vcvt.s32.f32 %v366
        %v383 = vcvt.s32.f32 %v367
        %v384 = vcvt.s32.f32 %v368
        %v385 = vcvt.s32.f32 %v369
        %v386 = vcvt.s32.f32 %v370
        %v387 = vcvt.s32.f32 %v371
        %v388 = vcvt.s32.f32 %v372
        %v389 = vcvt.s32.f32 %v373
        %v390 = vcvt.s32.f32 %v374
        %v391 = vcvt.s32.f32 %v375
        %v392 = vld [vmem:[#allocation2] sm:$0xff]
        %v393 = vld [vmem:[#allocation2 + $0x8] sm:$0xff]
        %v394 = vld [vmem:[#allocation2 + $0x10] sm:$0xff]
        %v395 = vld [vmem:[#allocation2 + $0x18] sm:$0xff]
        %v396 = vld [vmem:[#allocation2 + $0x20] sm:$0xff]
        %v397 = vld [vmem:[#allocation2 + $0x28] sm:$0xff]
        %v398 = vld [vmem:[#allocation2 + $0x30] sm:$0xff]
        %v399 = vld [vmem:[#allocation2 + $0x38] sm:$0xff]
        %v400 = vld [vmem:[#allocation2 + $0x40] sm:$0xff]
        %v401 = vld [vmem:[#allocation2 + $0x48] sm:$0xff]
        %v402 = vld [vmem:[#allocation2 + $0x50] sm:$0xff]
        %v403 = vld [vmem:[#allocation2 + $0x58] sm:$0xff]
        %v404 = vld [vmem:[#allocation2 + $0x60] sm:$0xff]
        %v405 = vld [vmem:[#allocation2 + $0x68] sm:$0xff]
        %v406 = vld [vmem:[#allocation2 + $0x70] sm:$0xff]
        %v407 = vld [vmem:[#allocation2 + $0x78] sm:$0xff]
        %408 = vmatpush.msra.mxu0 %v279
        %409 = vmatpush.msra.mxu0 %v278
        %410 = vmatpush.msra.mxu0 %v277
        %411 = vmatpush.msra.mxu0 %v276
        %412 = vmatpush.msra.mxu0 %v275
        %413 = vmatpush.msra.mxu0 %v274
        %414 = vmatpush.msra.mxu0 %v273
        %415 = vmatpush.msra.mxu0 %v272
        %416 = vmatpush.msra.mxu0 %v271
        %417 = vmatpush.msra.mxu0 %v270
        %418 = vmatpush.msra.mxu0 %v269
        %419 = vmatpush.msra.mxu0 %v268
        %420 = vmatpush.msra.mxu0 %v267
        %421 = vmatpush.msra.mxu0 %v266
        %422 = vmatpush.msra.mxu0 %v265
        %423 = vmatpush.msra.mxu0 %v264
        %424 = vmatmul.f32.gmra.mxu0 %v376
        %v425 = vpop.f32.mrf.mxu0
        %v426 = vadd.f32 0.0, %v425
        %427 = vmatmul.f32.gmra.mxu0 %v377
        %v428 = vpop.f32.mrf.mxu0
        %v429 = vadd.f32 0.0, %v428
        %430 = vmatmul.f32.gmra.mxu0 %v378
        %v431 = vpop.f32.mrf.mxu0
        %v432 = vadd.f32 0.0, %v431
        %433 = vmatmul.f32.gmra.mxu0 %v379
        %v434 = vpop.f32.mrf.mxu0
        %v435 = vadd.f32 0.0, %v434
        %436 = vmatmul.f32.gmra.mxu0 %v380
        %v437 = vpop.f32.mrf.mxu0
        %v438 = vadd.f32 0.0, %v437
        %439 = vmatmul.f32.gmra.mxu0 %v381
        %v440 = vpop.f32.mrf.mxu0
        %v441 = vadd.f32 0.0, %v440
        %442 = vmatmul.f32.gmra.mxu0 %v382
        %v443 = vpop.f32.mrf.mxu0
        %v444 = vadd.f32 0.0, %v443
        %445 = vmatmul.f32.gmra.mxu0 %v383
        %v446 = vpop.f32.mrf.mxu0
        %v447 = vadd.f32 0.0, %v446
        %448 = vmatmul.f32.gmra.mxu0 %v384
        %v449 = vpop.f32.mrf.mxu0
        %v450 = vadd.f32 0.0, %v449
        %451 = vmatmul.f32.gmra.mxu0 %v385
        %v452 = vpop.f32.mrf.mxu0
        %v453 = vadd.f32 0.0, %v452
        %454 = vmatmul.f32.gmra.mxu0 %v386
        %v455 = vpop.f32.mrf.mxu0
        %v456 = vadd.f32 0.0, %v455
        %457 = vmatmul.f32.gmra.mxu0 %v387
        %v458 = vpop.f32.mrf.mxu0
        %v459 = vadd.f32 0.0, %v458
        %460 = vmatmul.f32.gmra.mxu0 %v388
        %v461 = vpop.f32.mrf.mxu0
        %v462 = vadd.f32 0.0, %v461
        %463 = vmatmul.f32.gmra.mxu0 %v389
        %v464 = vpop.f32.mrf.mxu0
        %v465 = vadd.f32 0.0, %v464
        %466 = vmatmul.f32.gmra.mxu0 %v390
        %v467 = vpop.f32.mrf.mxu0
        %v468 = vadd.f32 0.0, %v467
        %469 = vmatmul.f32.gmra.mxu0 %v391
        %v470 = vpop.f32.mrf.mxu0
        %v471 = vadd.f32 0.0, %v470
        %472 = vdwg.mxu0
        %v473 = vadd.f32 %v392, %v426
        %v474 = vadd.f32 %v393, %v429
        %v475 = vadd.f32 %v394, %v432
        %v476 = vadd.f32 %v395, %v435
        %v477 = vadd.f32 %v396, %v438
        %v478 = vadd.f32 %v397, %v441
        %v479 = vadd.f32 %v398, %v444
        %v480 = vadd.f32 %v399, %v447
        %v481 = vadd.f32 %v400, %v450
        %v482 = vadd.f32 %v401, %v453
        %v483 = vadd.f32 %v402, %v456
        %v484 = vadd.f32 %v403, %v459
        %v485 = vadd.f32 %v404, %v462
        %v486 = vadd.f32 %v405, %v465
        %v487 = vadd.f32 %v406, %v468
        %v488 = vadd.f32 %v407, %v471
        %489 = vst [vmem:[#allocation2] sm:$0xff] %v473
        %490 = vst [vmem:[#allocation2 + $0x8] sm:$0xff] %v474
        %491 = vst [vmem:[#allocation2 + $0x10] sm:$0xff] %v475
        %492 = vst [vmem:[#allocation2 + $0x18] sm:$0xff] %v476
        %493 = vst [vmem:[#allocation2 + $0x20] sm:$0xff] %v477
        %494 = vst [vmem:[#allocation2 + $0x28] sm:$0xff] %v478
        %495 = vst [vmem:[#allocation2 + $0x30] sm:$0xff] %v479
        %496 = vst [vmem:[#allocation2 + $0x38] sm:$0xff] %v480
        %497 = vst [vmem:[#allocation2 + $0x40] sm:$0xff] %v481
        %498 = vst [vmem:[#allocation2 + $0x48] sm:$0xff] %v482
        %499 = vst [vmem:[#allocation2 + $0x50] sm:$0xff] %v483
        %500 = vst [vmem:[#allocation2 + $0x58] sm:$0xff] %v484
        %501 = vst [vmem:[#allocation2 + $0x60] sm:$0xff] %v485
        %502 = vst [vmem:[#allocation2 + $0x68] sm:$0xff] %v486
        %503 = vst [vmem:[#allocation2 + $0x70] sm:$0xff] %v487
        %504 = vst [vmem:[#allocation2 + $0x78] sm:$0xff] %v488
        %v505 = vld [vmem:[%s1] sm:$0xff]
        %v506 = vld [vmem:[%s1 + $0x8] sm:$0xff]
        %v507 = vld [vmem:[%s1 + $0x10] sm:$0xff]
        %v508 = vld [vmem:[%s1 + $0x18] sm:$0xff]
        %v509 = vld [vmem:[%s1 + $0x20] sm:$0xff]
        %v510 = vld [vmem:[%s1 + $0x28] sm:$0xff]
        %v511 = vld [vmem:[%s1 + $0x30] sm:$0xff]
        %v512 = vld [vmem:[%s1 + $0x38] sm:$0xff]
        %v513 = vld [vmem:[%s1 + $0x40] sm:$0xff]
        %v514 = vld [vmem:[%s1 + $0x48] sm:$0xff]
        %v515 = vld [vmem:[%s1 + $0x50] sm:$0xff]
        %v516 = vld [vmem:[%s1 + $0x58] sm:$0xff]
        %v517 = vld [vmem:[%s1 + $0x60] sm:$0xff]
        %v518 = vld [vmem:[%s1 + $0x68] sm:$0xff]
        %v519 = vld [vmem:[%s1 + $0x70] sm:$0xff]
        %v520 = vld [vmem:[%s1 + $0x78] sm:$0xff]
        %521 = vset.pattern.permute.xlu0 0
        %522 = vperm.xlu0 %521, %v505
        %v523 = vpop.permute.xlu0 %522
        %524 = vset.pattern.permute.xlu0 0
        %525 = vperm.xlu0 %524, %v506
        %v526 = vpop.permute.xlu0 %525
        %527 = vset.pattern.permute.xlu0 0
        %528 = vperm.xlu0 %527, %v507
        %v529 = vpop.permute.xlu0 %528
        %530 = vset.pattern.permute.xlu0 0
        %531 = vperm.xlu0 %530, %v508
        %v532 = vpop.permute.xlu0 %531
        %533 = vset.pattern.permute.xlu0 0
        %534 = vperm.xlu0 %533, %v509
        %v535 = vpop.permute.xlu0 %534
        %536 = vset.pattern.permute.xlu0 0
        %537 = vperm.xlu0 %536, %v510
        %v538 = vpop.permute.xlu0 %537
        %539 = vset.pattern.permute.xlu0 0
        %540 = vperm.xlu0 %539, %v511
        %v541 = vpop.permute.xlu0 %540
        %542 = vset.pattern.permute.xlu0 0
        %543 = vperm.xlu0 %542, %v512
        %v544 = vpop.permute.xlu0 %543
        %545 = vset.pattern.permute.xlu0 0
        %546 = vperm.xlu0 %545, %v513
        %v547 = vpop.permute.xlu0 %546
        %548 = vset.pattern.permute.xlu0 0
        %549 = vperm.xlu0 %548, %v514
        %v550 = vpop.permute.xlu0 %549
        %551 = vset.pattern.permute.xlu0 0
        %552 = vperm.xlu0 %551, %v515
        %v553 = vpop.permute.xlu0 %552
        %554 = vset.pattern.permute.xlu0 0
        %555 = vperm.xlu0 %554, %v516
        %v556 = vpop.permute.xlu0 %555
        %557 = vset.pattern.permute.xlu0 0
        %558 = vperm.xlu0 %557, %v517
        %v559 = vpop.permute.xlu0 %558
        %560 = vset.pattern.permute.xlu0 0
        %561 = vperm.xlu0 %560, %v518
        %v562 = vpop.permute.xlu0 %561
        %563 = vset.pattern.permute.xlu0 0
        %564 = vperm.xlu0 %563, %v519
        %v565 = vpop.permute.xlu0 %564
        %566 = vset.pattern.permute.xlu0 0
        %567 = vperm.xlu0 %566, %v520
        %v568 = vpop.permute.xlu0 %567
        %vm569 = vcmp.eq.s32.totalorder %v263, %v523
        %vm570 = vcmp.eq.s32.totalorder %v263, %v526
        %vm571 = vcmp.eq.s32.totalorder %v263, %v529
        %vm572 = vcmp.eq.s32.totalorder %v263, %v532
        %vm573 = vcmp.eq.s32.totalorder %v263, %v535
        %vm574 = vcmp.eq.s32.totalorder %v263, %v538
        %vm575 = vcmp.eq.s32.totalorder %v263, %v541
        %vm576 = vcmp.eq.s32.totalorder %v263, %v544
        %vm577 = vcmp.eq.s32.totalorder %v263, %v547
        %vm578 = vcmp.eq.s32.totalorder %v263, %v550
        %vm579 = vcmp.eq.s32.totalorder %v263, %v553
        %vm580 = vcmp.eq.s32.totalorder %v263, %v556
        %vm581 = vcmp.eq.s32.totalorder %v263, %v559
        %vm582 = vcmp.eq.s32.totalorder %v263, %v562
        %vm583 = vcmp.eq.s32.totalorder %v263, %v565
        %vm584 = vcmp.eq.s32.totalorder %v263, %v568
        %v585 = vsel %vm569, 1, 0
        %v586 = vsel %vm570, 1, 0
        %v587 = vsel %vm571, 1, 0
        %v588 = vsel %vm572, 1, 0
        %v589 = vsel %vm573, 1, 0
        %v590 = vsel %vm574, 1, 0
        %v591 = vsel %vm575, 1, 0
        %v592 = vsel %vm576, 1, 0
        %v593 = vsel %vm577, 1, 0
        %v594 = vsel %vm578, 1, 0
        %v595 = vsel %vm579, 1, 0
        %v596 = vsel %vm580, 1, 0
        %v597 = vsel %vm581, 1, 0
        %v598 = vsel %vm582, 1, 0
        %v599 = vsel %vm583, 1, 0
        %v600 = vsel %vm584, 1, 0
        %v601 = vcvt.s32.f32 %v585
        %v602 = vcvt.s32.f32 %v586
        %v603 = vcvt.s32.f32 %v587
        %v604 = vcvt.s32.f32 %v588
        %v605 = vcvt.s32.f32 %v589
        %v606 = vcvt.s32.f32 %v590
        %v607 = vcvt.s32.f32 %v591
        %v608 = vcvt.s32.f32 %v592
        %v609 = vcvt.s32.f32 %v593
        %v610 = vcvt.s32.f32 %v594
        %v611 = vcvt.s32.f32 %v595
        %v612 = vcvt.s32.f32 %v596
        %v613 = vcvt.s32.f32 %v597
        %v614 = vcvt.s32.f32 %v598
        %v615 = vcvt.s32.f32 %v599
        %v616 = vcvt.s32.f32 %v600
        %617 = vset.pattern.permute.xlu0 1
        %618 = vperm.xlu0 %617, %v505
        %v619 = vpop.permute.xlu0 %618
        %620 = vset.pattern.permute.xlu0 1
        %621 = vperm.xlu0 %620, %v506
        %v622 = vpop.permute.xlu0 %621
        %623 = vset.pattern.permute.xlu0 1
        %624 = vperm.xlu0 %623, %v507
        %v625 = vpop.permute.xlu0 %624
        %626 = vset.pattern.permute.xlu0 1
        %627 = vperm.xlu0 %626, %v508
        %v628 = vpop.permute.xlu0 %627
        %629 = vset.pattern.permute.xlu0 1
        %630 = vperm.xlu0 %629, %v509
        %v631 = vpop.permute.xlu0 %630
        %632 = vset.pattern.permute.xlu0 1
        %633 = vperm.xlu0 %632, %v510
        %v634 = vpop.permute.xlu0 %633
        %635 = vset.pattern.permute.xlu0 1
        %636 = vperm.xlu0 %635, %v511
        %v637 = vpop.permute.xlu0 %636
        %638 = vset.pattern.permute.xlu0 1
        %639 = vperm.xlu0 %638, %v512
        %v640 = vpop.permute.xlu0 %639
        %641 = vset.pattern.permute.xlu0 1
        %642 = vperm.xlu0 %641, %v513
        %v643 = vpop.permute.xlu0 %642
        %644 = vset.pattern.permute.xlu0 1
        %645 = vperm.xlu0 %644, %v514
        %v646 = vpop.permute.xlu0 %645
        %647 = vset.pattern.permute.xlu0 1
        %648 = vperm.xlu0 %647, %v515
        %v649 = vpop.permute.xlu0 %648
        %650 = vset.pattern.permute.xlu0 1
        %651 = vperm.xlu0 %650, %v516
        %v652 = vpop.permute.xlu0 %651
        %653 = vset.pattern.permute.xlu0 1
        %654 = vperm.xlu0 %653, %v517
        %v655 = vpop.permute.xlu0 %654
        %656 = vset.pattern.permute.xlu0 1
        %657 = vperm.xlu0 %656, %v518
        %v658 = vpop.permute.xlu0 %657
        %659 = vset.pattern.permute.xlu0 1
        %660 = vperm.xlu0 %659, %v519
        %v661 = vpop.permute.xlu0 %660
        %662 = vset.pattern.permute.xlu0 1
        %663 = vperm.xlu0 %662, %v520
        %v664 = vpop.permute.xlu0 %663
        %vm665 = vcmp.eq.s32.totalorder %v263, %v619
        %vm666 = vcmp.eq.s32.totalorder %v263, %v622
        %vm667 = vcmp.eq.s32.totalorder %v263, %v625
        %vm668 = vcmp.eq.s32.totalorder %v263, %v628
        %vm669 = vcmp.eq.s32.totalorder %v263, %v631
        %vm670 = vcmp.eq.s32.totalorder %v263, %v634
        %vm671 = vcmp.eq.s32.totalorder %v263, %v637
        %vm672 = vcmp.eq.s32.totalorder %v263, %v640
        %vm673 = vcmp.eq.s32.totalorder %v263, %v643
        %vm674 = vcmp.eq.s32.totalorder %v263, %v646
        %vm675 = vcmp.eq.s32.totalorder %v263, %v649
        %vm676 = vcmp.eq.s32.totalorder %v263, %v652
        %vm677 = vcmp.eq.s32.totalorder %v263, %v655
        %vm678 = vcmp.eq.s32.totalorder %v263, %v658
        %vm679 = vcmp.eq.s32.totalorder %v263, %v661
        %vm680 = vcmp.eq.s32.totalorder %v263, %v664
        %v681 = vsel %vm665, 1, 0
        %v682 = vsel %vm666, 1, 0
        %v683 = vsel %vm667, 1, 0
        %v684 = vsel %vm668, 1, 0
        %v685 = vsel %vm669, 1, 0
        %v686 = vsel %vm670, 1, 0
        %v687 = vsel %vm671, 1, 0
        %v688 = vsel %vm672, 1, 0
        %v689 = vsel %vm673, 1, 0
        %v690 = vsel %vm674, 1, 0
        %v691 = vsel %vm675, 1, 0
        %v692 = vsel %vm676, 1, 0
        %v693 = vsel %vm677, 1, 0
        %v694 = vsel %vm678, 1, 0
        %v695 = vsel %vm679, 1, 0
        %v696 = vsel %vm680, 1, 0
        %v697 = vcvt.s32.f32 %v681
        %v698 = vcvt.s32.f32 %v682
        %v699 = vcvt.s32.f32 %v683
        %v700 = vcvt.s32.f32 %v684
        %v701 = vcvt.s32.f32 %v685
        %v702 = vcvt.s32.f32 %v686
        %v703 = vcvt.s32.f32 %v687
        %v704 = vcvt.s32.f32 %v688
        %v705 = vcvt.s32.f32 %v689
        %v706 = vcvt.s32.f32 %v690
        %v707 = vcvt.s32.f32 %v691
        %v708 = vcvt.s32.f32 %v692
        %v709 = vcvt.s32.f32 %v693
        %v710 = vcvt.s32.f32 %v694
        %v711 = vcvt.s32.f32 %v695
        %v712 = vcvt.s32.f32 %v696
        %v713 = vadd.f32 %v601, %v697
        %v714 = vadd.f32 %v602, %v698
        %v715 = vadd.f32 %v603, %v699
        %v716 = vadd.f32 %v604, %v700
        %v717 = vadd.f32 %v605, %v701
        %v718 = vadd.f32 %v606, %v702
        %v719 = vadd.f32 %v607, %v703
        %v720 = vadd.f32 %v608, %v704
        %v721 = vadd.f32 %v609, %v705
        %v722 = vadd.f32 %v610, %v706
        %v723 = vadd.f32 %v611, %v707
        %v724 = vadd.f32 %v612, %v708
        %v725 = vadd.f32 %v613, %v709
        %v726 = vadd.f32 %v614, %v710
        %v727 = vadd.f32 %v615, %v711
        %v728 = vadd.f32 %v616, %v712
        %729 = vset.pattern.permute.xlu0 2
        %730 = vperm.xlu0 %729, %v505
        %v731 = vpop.permute.xlu0 %730
        %732 = vset.pattern.permute.xlu0 2
        %733 = vperm.xlu0 %732, %v506
        %v734 = vpop.permute.xlu0 %733
        %735 = vset.pattern.permute.xlu0 2
        %736 = vperm.xlu0 %735, %v507
        %v737 = vpop.permute.xlu0 %736
        %738 = vset.pattern.permute.xlu0 2
        %739 = vperm.xlu0 %738, %v508
        %v740 = vpop.permute.xlu0 %739
        %741 = vset.pattern.permute.xlu0 2
        %742 = vperm.xlu0 %741, %v509
        %v743 = vpop.permute.xlu0 %742
        %744 = vset.pattern.permute.xlu0 2
        %745 = vperm.xlu0 %744, %v510
        %v746 = vpop.permute.xlu0 %745
        %747 = vset.pattern.permute.xlu0 2
        %748 = vperm.xlu0 %747, %v511
        %v749 = vpop.permute.xlu0 %748
        %750 = vset.pattern.permute.xlu0 2
        %751 = vperm.xlu0 %750, %v512
        %v752 = vpop.permute.xlu0 %751
        %753 = vset.pattern.permute.xlu0 2
        %754 = vperm.xlu0 %753, %v513
        %v755 = vpop.permute.xlu0 %754
        %756 = vset.pattern.permute.xlu0 2
        %757 = vperm.xlu0 %756, %v514
        %v758 = vpop.permute.xlu0 %757
        %759 = vset.pattern.permute.xlu0 2
        %760 = vperm.xlu0 %759, %v515
        %v761 = vpop.permute.xlu0 %760
        %762 = vset.pattern.permute.xlu0 2
        %763 = vperm.xlu0 %762, %v516
        %v764 = vpop.permute.xlu0 %763
        %765 = vset.pattern.permute.xlu0 2
        %766 = vperm.xlu0 %765, %v517
        %v767 = vpop.permute.xlu0 %766
        %768 = vset.pattern.permute.xlu0 2
        %769 = vperm.xlu0 %768, %v518
        %v770 = vpop.permute.xlu0 %769
        %771 = vset.pattern.permute.xlu0 2
        %772 = vperm.xlu0 %771, %v519
        %v773 = vpop.permute.xlu0 %772
        %774 = vset.pattern.permute.xlu0 2
        %775 = vperm.xlu0 %774, %v520
        %v776 = vpop.permute.xlu0 %775
        %vm777 = vcmp.eq.s32.totalorder %v263, %v731
        %vm778 = vcmp.eq.s32.totalorder %v263, %v734
        %vm779 = vcmp.eq.s32.totalorder %v263, %v737
        %vm780 = vcmp.eq.s32.totalorder %v263, %v740
        %vm781 = vcmp.eq.s32.totalorder %v263, %v743
        %vm782 = vcmp.eq.s32.totalorder %v263, %v746
        %vm783 = vcmp.eq.s32.totalorder %v263, %v749
        %vm784 = vcmp.eq.s32.totalorder %v263, %v752
        %vm785 = vcmp.eq.s32.totalorder %v263, %v755
        %vm786 = vcmp.eq.s32.totalorder %v263, %v758
        %vm787 = vcmp.eq.s32.totalorder %v263, %v761
        %vm788 = vcmp.eq.s32.totalorder %v263, %v764
        %vm789 = vcmp.eq.s32.totalorder %v263, %v767
        %vm790 = vcmp.eq.s32.totalorder %v263, %v770
        %vm791 = vcmp.eq.s32.totalorder %v263, %v773
        %vm792 = vcmp.eq.s32.totalorder %v263, %v776
        %v793 = vsel %vm777, 1, 0
        %v794 = vsel %vm778, 1, 0
        %v795 = vsel %vm779, 1, 0
        %v796 = vsel %vm780, 1, 0
        %v797 = vsel %vm781, 1, 0
        %v798 = vsel %vm782, 1, 0
        %v799 = vsel %vm783, 1, 0
        %v800 = vsel %vm784, 1, 0
        %v801 = vsel %vm785, 1, 0
        %v802 = vsel %vm786, 1, 0
        %v803 = vsel %vm787, 1, 0
        %v804 = vsel %vm788, 1, 0
        %v805 = vsel %vm789, 1, 0
        %v806 = vsel %vm790, 1, 0
        %v807 = vsel %vm791, 1, 0
        %v808 = vsel %vm792, 1, 0
        %v809 = vcvt.s32.f32 %v793
        %v810 = vcvt.s32.f32 %v794
        %v811 = vcvt.s32.f32 %v795
        %v812 = vcvt.s32.f32 %v796
        %v813 = vcvt.s32.f32 %v797
        %v814 = vcvt.s32.f32 %v798
        %v815 = vcvt.s32.f32 %v799
        %v816 = vcvt.s32.f32 %v800
        %v817 = vcvt.s32.f32 %v801
        %v818 = vcvt.s32.f32 %v802
        %v819 = vcvt.s32.f32 %v803
        %v820 = vcvt.s32.f32 %v804
        %v821 = vcvt.s32.f32 %v805
        %v822 = vcvt.s32.f32 %v806
        %v823 = vcvt.s32.f32 %v807
        %v824 = vcvt.s32.f32 %v808
        %v825 = vadd.f32 %v713, %v809
        %v826 = vadd.f32 %v714, %v810
        %v827 = vadd.f32 %v715, %v811
        %v828 = vadd.f32 %v716, %v812
        %v829 = vadd.f32 %v717, %v813
        %v830 = vadd.f32 %v718, %v814
        %v831 = vadd.f32 %v719, %v815
        %v832 = vadd.f32 %v720, %v816
        %v833 = vadd.f32 %v721, %v817
        %v834 = vadd.f32 %v722, %v818
        %v835 = vadd.f32 %v723, %v819
        %v836 = vadd.f32 %v724, %v820
        %v837 = vadd.f32 %v725, %v821
        %v838 = vadd.f32 %v726, %v822
        %v839 = vadd.f32 %v727, %v823
        %v840 = vadd.f32 %v728, %v824
        %841 = vset.pattern.permute.xlu0 3
        %842 = vperm.xlu0 %841, %v505
        %v843 = vpop.permute.xlu0 %842
        %844 = vset.pattern.permute.xlu0 3
        %845 = vperm.xlu0 %844, %v506
        %v846 = vpop.permute.xlu0 %845
        %847 = vset.pattern.permute.xlu0 3
        %848 = vperm.xlu0 %847, %v507
        %v849 = vpop.permute.xlu0 %848
        %850 = vset.pattern.permute.xlu0 3
        %851 = vperm.xlu0 %850, %v508
        %v852 = vpop.permute.xlu0 %851
        %853 = vset.pattern.permute.xlu0 3
        %854 = vperm.xlu0 %853, %v509
        %v855 = vpop.permute.xlu0 %854
        %856 = vset.pattern.permute.xlu0 3
        %857 = vperm.xlu0 %856, %v510
        %v858 = vpop.permute.xlu0 %857
        %859 = vset.pattern.permute.xlu0 3
        %860 = vperm.xlu0 %859, %v511
        %v861 = vpop.permute.xlu0 %860
        %862 = vset.pattern.permute.xlu0 3
        %863 = vperm.xlu0 %862, %v512
        %v864 = vpop.permute.xlu0 %863
        %865 = vset.pattern.permute.xlu0 3
        %866 = vperm.xlu0 %865, %v513
        %v867 = vpop.permute.xlu0 %866
        %868 = vset.pattern.permute.xlu0 3
        %869 = vperm.xlu0 %868, %v514
        %v870 = vpop.permute.xlu0 %869
        %871 = vset.pattern.permute.xlu0 3
        %872 = vperm.xlu0 %871, %v515
        %v873 = vpop.permute.xlu0 %872
        %874 = vset.pattern.permute.xlu0 3
        %875 = vperm.xlu0 %874, %v516
        %v876 = vpop.permute.xlu0 %875
        %877 = vset.pattern.permute.xlu0 3
        %878 = vperm.xlu0 %877, %v517
        %v879 = vpop.permute.xlu0 %878
        %880 = vset.pattern.permute.xlu0 3
        %881 = vperm.xlu0 %880, %v518
        %v882 = vpop.permute.xlu0 %881
        %883 = vset.pattern.permute.xlu0 3
        %884 = vperm.xlu0 %883, %v519
        %v885 = vpop.permute.xlu0 %884
        %886 = vset.pattern.permute.xlu0 3
        %887 = vperm.xlu0 %886, %v520
        %v888 = vpop.permute.xlu0 %887
        %vm889 = vcmp.eq.s32.totalorder %v263, %v843
        %vm890 = vcmp.eq.s32.totalorder %v263, %v846
        %vm891 = vcmp.eq.s32.totalorder %v263, %v849
        %vm892 = vcmp.eq.s32.totalorder %v263, %v852
        %vm893 = vcmp.eq.s32.totalorder %v263, %v855
        %vm894 = vcmp.eq.s32.totalorder %v263, %v858
        %vm895 = vcmp.eq.s32.totalorder %v263, %v861
        %vm896 = vcmp.eq.s32.totalorder %v263, %v864
        %vm897 = vcmp.eq.s32.totalorder %v263, %v867
        %vm898 = vcmp.eq.s32.totalorder %v263, %v870
        %vm899 = vcmp.eq.s32.totalorder %v263, %v873
        %vm900 = vcmp.eq.s32.totalorder %v263, %v876
        %vm901 = vcmp.eq.s32.totalorder %v263, %v879
        %vm902 = vcmp.eq.s32.totalorder %v263, %v882
        %vm903 = vcmp.eq.s32.totalorder %v263, %v885
        %vm904 = vcmp.eq.s32.totalorder %v263, %v888
        %v905 = vsel %vm889, 1, 0
        %v906 = vsel %vm890, 1, 0
        %v907 = vsel %vm891, 1, 0
        %v908 = vsel %vm892, 1, 0
        %v909 = vsel %vm893, 1, 0
        %v910 = vsel %vm894, 1, 0
        %v911 = vsel %vm895, 1, 0
        %v912 = vsel %vm896, 1, 0
        %v913 = vsel %vm897, 1, 0
        %v914 = vsel %vm898, 1, 0
        %v915 = vsel %vm899, 1, 0
        %v916 = vsel %vm900, 1, 0
        %v917 = vsel %vm901, 1, 0
        %v918 = vsel %vm902, 1, 0
        %v919 = vsel %vm903, 1, 0
        %v920 = vsel %vm904, 1, 0
        %v921 = vcvt.s32.f32 %v905
        %v922 = vcvt.s32.f32 %v906
        %v923 = vcvt.s32.f32 %v907
        %v924 = vcvt.s32.f32 %v908
        %v925 = vcvt.s32.f32 %v909
        %v926 = vcvt.s32.f32 %v910
        %v927 = vcvt.s32.f32 %v911
        %v928 = vcvt.s32.f32 %v912
        %v929 = vcvt.s32.f32 %v913
        %v930 = vcvt.s32.f32 %v914
        %v931 = vcvt.s32.f32 %v915
        %v932 = vcvt.s32.f32 %v916
        %v933 = vcvt.s32.f32 %v917
        %v934 = vcvt.s32.f32 %v918
        %v935 = vcvt.s32.f32 %v919
        %v936 = vcvt.s32.f32 %v920
        %v937 = vadd.f32 %v825, %v921
        %v938 = vadd.f32 %v826, %v922
        %v939 = vadd.f32 %v827, %v923
        %v940 = vadd.f32 %v828, %v924
        %v941 = vadd.f32 %v829, %v925
        %v942 = vadd.f32 %v830, %v926
        %v943 = vadd.f32 %v831, %v927
        %v944 = vadd.f32 %v832, %v928
        %v945 = vadd.f32 %v833, %v929
        %v946 = vadd.f32 %v834, %v930
        %v947 = vadd.f32 %v835, %v931
        %v948 = vadd.f32 %v836, %v932
        %v949 = vadd.f32 %v837, %v933
        %v950 = vadd.f32 %v838, %v934
        %v951 = vadd.f32 %v839, %v935
        %v952 = vadd.f32 %v840, %v936
        %v953 = vld [vmem:[#allocation3] sm:$0xff]
        %v954 = vld [vmem:[#allocation3 + $0x8] sm:$0xff]
        %v955 = vld [vmem:[#allocation3 + $0x10] sm:$0xff]
        %v956 = vld [vmem:[#allocation3 + $0x18] sm:$0xff]
        %v957 = vld [vmem:[#allocation3 + $0x20] sm:$0xff]
        %v958 = vld [vmem:[#allocation3 + $0x28] sm:$0xff]
        %v959 = vld [vmem:[#allocation3 + $0x30] sm:$0xff]
        %v960 = vld [vmem:[#allocation3 + $0x38] sm:$0xff]
        %v961 = vld [vmem:[#allocation3 + $0x40] sm:$0xff]
        %v962 = vld [vmem:[#allocation3 + $0x48] sm:$0xff]
        %v963 = vld [vmem:[#allocation3 + $0x50] sm:$0xff]
        %v964 = vld [vmem:[#allocation3 + $0x58] sm:$0xff]
        %v965 = vld [vmem:[#allocation3 + $0x60] sm:$0xff]
        %v966 = vld [vmem:[#allocation3 + $0x68] sm:$0xff]
        %v967 = vld [vmem:[#allocation3 + $0x70] sm:$0xff]
        %v968 = vld [vmem:[#allocation3 + $0x78] sm:$0xff]
        %969 = vmatpush.msra.mxu0 %v279
        %970 = vmatpush.msra.mxu0 %v278
        %971 = vmatpush.msra.mxu0 %v277
        %972 = vmatpush.msra.mxu0 %v276
        %973 = vmatpush.msra.mxu0 %v275
        %974 = vmatpush.msra.mxu0 %v274
        %975 = vmatpush.msra.mxu0 %v273
        %976 = vmatpush.msra.mxu0 %v272
        %977 = vmatpush.msra.mxu0 %v271
        %978 = vmatpush.msra.mxu0 %v270
        %979 = vmatpush.msra.mxu0 %v269
        %980 = vmatpush.msra.mxu0 %v268
        %981 = vmatpush.msra.mxu0 %v267
        %982 = vmatpush.msra.mxu0 %v266
        %983 = vmatpush.msra.mxu0 %v265
        %984 = vmatpush.msra.mxu0 %v264
        %985 = vmatmul.f32.gmra.mxu0 %v937
        %v986 = vpop.f32.mrf.mxu0
        %v987 = vadd.f32 0.0, %v986
        %988 = vmatmul.f32.gmra.mxu0 %v938
        %v989 = vpop.f32.mrf.mxu0
        %v990 = vadd.f32 0.0, %v989
        %991 = vmatmul.f32.gmra.mxu0 %v939
        %v992 = vpop.f32.mrf.mxu0
        %v993 = vadd.f32 0.0, %v992
        %994 = vmatmul.f32.gmra.mxu0 %v940
        %v995 = vpop.f32.mrf.mxu0
        %v996 = vadd.f32 0.0, %v995
        %997 = vmatmul.f32.gmra.mxu0 %v941
        %v998 = vpop.f32.mrf.mxu0
        %v999 = vadd.f32 0.0, %v998
        %1000 = vmatmul.f32.gmra.mxu0 %v942
        %v1001 = vpop.f32.mrf.mxu0
        %v1002 = vadd.f32 0.0, %v1001
        %1003 = vmatmul.f32.gmra.mxu0 %v943
        %v1004 = vpop.f32.mrf.mxu0
        %v1005 = vadd.f32 0.0, %v1004
        %1006 = vmatmul.f32.gmra.mxu0 %v944
        %v1007 = vpop.f32.mrf.mxu0
        %v1008 = vadd.f32 0.0, %v1007
        %1009 = vmatmul.f32.gmra.mxu0 %v945
        %v1010 = vpop.f32.mrf.mxu0
        %v1011 = vadd.f32 0.0, %v1010
        %1012 = vmatmul.f32.gmra.mxu0 %v946
        %v1013 = vpop.f32.mrf.mxu0
        %v1014 = vadd.f32 0.0, %v1013
        %1015 = vmatmul.f32.gmra.mxu0 %v947
        %v1016 = vpop.f32.mrf.mxu0
        %v1017 = vadd.f32 0.0, %v1016
        %1018 = vmatmul.f32.gmra.mxu0 %v948
        %v1019 = vpop.f32.mrf.mxu0
        %v1020 = vadd.f32 0.0, %v1019
        %1021 = vmatmul.f32.gmra.mxu0 %v949
        %v1022 = vpop.f32.mrf.mxu0
        %v1023 = vadd.f32 0.0, %v1022
        %1024 = vmatmul.f32.gmra.mxu0 %v950
        %v1025 = vpop.f32.mrf.mxu0
        %v1026 = vadd.f32 0.0, %v1025
        %1027 = vmatmul.f32.gmra.mxu0 %v951
        %v1028 = vpop.f32.mrf.mxu0
        %v1029 = vadd.f32 0.0, %v1028
        %1030 = vmatmul.f32.gmra.mxu0 %v952
        %v1031 = vpop.f32.mrf.mxu0
        %v1032 = vadd.f32 0.0, %v1031
        %1033 = vdwg.mxu0
        %v1034 = vadd.f32 %v953, %v987
        %v1035 = vadd.f32 %v954, %v990
        %v1036 = vadd.f32 %v955, %v993
        %v1037 = vadd.f32 %v956, %v996
        %v1038 = vadd.f32 %v957, %v999
        %v1039 = vadd.f32 %v958, %v1002
        %v1040 = vadd.f32 %v959, %v1005
        %v1041 = vadd.f32 %v960, %v1008
        %v1042 = vadd.f32 %v961, %v1011
        %v1043 = vadd.f32 %v962, %v1014
        %v1044 = vadd.f32 %v963, %v1017
        %v1045 = vadd.f32 %v964, %v1020
        %v1046 = vadd.f32 %v965, %v1023
        %v1047 = vadd.f32 %v966, %v1026
        %v1048 = vadd.f32 %v967, %v1029
        %v1049 = vadd.f32 %v968, %v1032
        %1050 = vst [vmem:[#allocation3] sm:$0xff] %v1034
        %1051 = vst [vmem:[#allocation3 + $0x8] sm:$0xff] %v1035
        %1052 = vst [vmem:[#allocation3 + $0x10] sm:$0xff] %v1036
        %1053 = vst [vmem:[#allocation3 + $0x18] sm:$0xff] %v1037
        %1054 = vst [vmem:[#allocation3 + $0x20] sm:$0xff] %v1038
        %1055 = vst [vmem:[#allocation3 + $0x28] sm:$0xff] %v1039
        %1056 = vst [vmem:[#allocation3 + $0x30] sm:$0xff] %v1040
        %1057 = vst [vmem:[#allocation3 + $0x38] sm:$0xff] %v1041
        %1058 = vst [vmem:[#allocation3 + $0x40] sm:$0xff] %v1042
        %1059 = vst [vmem:[#allocation3 + $0x48] sm:$0xff] %v1043
        %1060 = vst [vmem:[#allocation3 + $0x50] sm:$0xff] %v1044
        %1061 = vst [vmem:[#allocation3 + $0x58] sm:$0xff] %v1045
        %1062 = vst [vmem:[#allocation3 + $0x60] sm:$0xff] %v1046
        %1063 = vst [vmem:[#allocation3 + $0x68] sm:$0xff] %v1047
        %1064 = vst [vmem:[#allocation3 + $0x70] sm:$0xff] %v1048
        %1065 = vst [vmem:[#allocation3 + $0x78] sm:$0xff] %v1049
        %v1066 = vld [vmem:[%s2] sm:$0xff]
        %v1067 = vld [vmem:[%s2 + $0x8] sm:$0xff]
        %v1068 = vld [vmem:[%s2 + $0x10] sm:$0xff]
        %v1069 = vld [vmem:[%s2 + $0x18] sm:$0xff]
        %v1070 = vld [vmem:[%s2 + $0x20] sm:$0xff]
        %v1071 = vld [vmem:[%s2 + $0x28] sm:$0xff]
        %v1072 = vld [vmem:[%s2 + $0x30] sm:$0xff]
        %v1073 = vld [vmem:[%s2 + $0x38] sm:$0xff]
        %v1074 = vld [vmem:[%s2 + $0x40] sm:$0xff]
        %v1075 = vld [vmem:[%s2 + $0x48] sm:$0xff]
        %v1076 = vld [vmem:[%s2 + $0x50] sm:$0xff]
        %v1077 = vld [vmem:[%s2 + $0x58] sm:$0xff]
        %v1078 = vld [vmem:[%s2 + $0x60] sm:$0xff]
        %v1079 = vld [vmem:[%s2 + $0x68] sm:$0xff]
        %v1080 = vld [vmem:[%s2 + $0x70] sm:$0xff]
        %v1081 = vld [vmem:[%s2 + $0x78] sm:$0xff]
        %1082 = vset.pattern.permute.xlu0 0
        %1083 = vperm.xlu0 %1082, %v1066
        %v1084 = vpop.permute.xlu0 %1083
        %1085 = vset.pattern.permute.xlu0 0
        %1086 = vperm.xlu0 %1085, %v1067
        %v1087 = vpop.permute.xlu0 %1086
        %1088 = vset.pattern.permute.xlu0 0
        %1089 = vperm.xlu0 %1088, %v1068
        %v1090 = vpop.permute.xlu0 %1089
        %1091 = vset.pattern.permute.xlu0 0
        %1092 = vperm.xlu0 %1091, %v1069
        %v1093 = vpop.permute.xlu0 %1092
        %1094 = vset.pattern.permute.xlu0 0
        %1095 = vperm.xlu0 %1094, %v1070
        %v1096 = vpop.permute.xlu0 %1095
        %1097 = vset.pattern.permute.xlu0 0
        %1098 = vperm.xlu0 %1097, %v1071
        %v1099 = vpop.permute.xlu0 %1098
        %1100 = vset.pattern.permute.xlu0 0
        %1101 = vperm.xlu0 %1100, %v1072
        %v1102 = vpop.permute.xlu0 %1101
        %1103 = vset.pattern.permute.xlu0 0
        %1104 = vperm.xlu0 %1103, %v1073
        %v1105 = vpop.permute.xlu0 %1104
        %1106 = vset.pattern.permute.xlu0 0
        %1107 = vperm.xlu0 %1106, %v1074
        %v1108 = vpop.permute.xlu0 %1107
        %1109 = vset.pattern.permute.xlu0 0
        %1110 = vperm.xlu0 %1109, %v1075
        %v1111 = vpop.permute.xlu0 %1110
        %1112 = vset.pattern.permute.xlu0 0
        %1113 = vperm.xlu0 %1112, %v1076
        %v1114 = vpop.permute.xlu0 %1113
        %1115 = vset.pattern.permute.xlu0 0
        %1116 = vperm.xlu0 %1115, %v1077
        %v1117 = vpop.permute.xlu0 %1116
        %1118 = vset.pattern.permute.xlu0 0
        %1119 = vperm.xlu0 %1118, %v1078
        %v1120 = vpop.permute.xlu0 %1119
        %1121 = vset.pattern.permute.xlu0 0
        %1122 = vperm.xlu0 %1121, %v1079
        %v1123 = vpop.permute.xlu0 %1122
        %1124 = vset.pattern.permute.xlu0 0
        %1125 = vperm.xlu0 %1124, %v1080
        %v1126 = vpop.permute.xlu0 %1125
        %1127 = vset.pattern.permute.xlu0 0
        %1128 = vperm.xlu0 %1127, %v1081
        %v1129 = vpop.permute.xlu0 %1128
        %vm1130 = vcmp.eq.s32.totalorder %v263, %v1084
        %vm1131 = vcmp.eq.s32.totalorder %v263, %v1087
        %vm1132 = vcmp.eq.s32.totalorder %v263, %v1090
        %vm1133 = vcmp.eq.s32.totalorder %v263, %v1093
        %vm1134 = vcmp.eq.s32.totalorder %v263, %v1096
        %vm1135 = vcmp.eq.s32.totalorder %v263, %v1099
        %vm1136 = vcmp.eq.s32.totalorder %v263, %v1102
        %vm1137 = vcmp.eq.s32.totalorder %v263, %v1105
        %vm1138 = vcmp.eq.s32.totalorder %v263, %v1108
        %vm1139 = vcmp.eq.s32.totalorder %v263, %v1111
        %vm1140 = vcmp.eq.s32.totalorder %v263, %v1114
        %vm1141 = vcmp.eq.s32.totalorder %v263, %v1117
        %vm1142 = vcmp.eq.s32.totalorder %v263, %v1120
        %vm1143 = vcmp.eq.s32.totalorder %v263, %v1123
        %vm1144 = vcmp.eq.s32.totalorder %v263, %v1126
        %vm1145 = vcmp.eq.s32.totalorder %v263, %v1129
        %v1146 = vsel %vm1130, 1, 0
        %v1147 = vsel %vm1131, 1, 0
        %v1148 = vsel %vm1132, 1, 0
        %v1149 = vsel %vm1133, 1, 0
        %v1150 = vsel %vm1134, 1, 0
        %v1151 = vsel %vm1135, 1, 0
        %v1152 = vsel %vm1136, 1, 0
        %v1153 = vsel %vm1137, 1, 0
        %v1154 = vsel %vm1138, 1, 0
        %v1155 = vsel %vm1139, 1, 0
        %v1156 = vsel %vm1140, 1, 0
        %v1157 = vsel %vm1141, 1, 0
        %v1158 = vsel %vm1142, 1, 0
        %v1159 = vsel %vm1143, 1, 0
        %v1160 = vsel %vm1144, 1, 0
        %v1161 = vsel %vm1145, 1, 0
        %v1162 = vcvt.s32.f32 %v1146
        %v1163 = vcvt.s32.f32 %v1147
        %v1164 = vcvt.s32.f32 %v1148
        %v1165 = vcvt.s32.f32 %v1149
        %v1166 = vcvt.s32.f32 %v1150
        %v1167 = vcvt.s32.f32 %v1151
        %v1168 = vcvt.s32.f32 %v1152
        %v1169 = vcvt.s32.f32 %v1153
        %v1170 = vcvt.s32.f32 %v1154
        %v1171 = vcvt.s32.f32 %v1155
        %v1172 = vcvt.s32.f32 %v1156
        %v1173 = vcvt.s32.f32 %v1157
        %v1174 = vcvt.s32.f32 %v1158
        %v1175 = vcvt.s32.f32 %v1159
        %v1176 = vcvt.s32.f32 %v1160
        %v1177 = vcvt.s32.f32 %v1161
        %1178 = vset.pattern.permute.xlu0 1
        %1179 = vperm.xlu0 %1178, %v1066
        %v1180 = vpop.permute.xlu0 %1179
        %1181 = vset.pattern.permute.xlu0 1
        %1182 = vperm.xlu0 %1181, %v1067
        %v1183 = vpop.permute.xlu0 %1182
        %1184 = vset.pattern.permute.xlu0 1
        %1185 = vperm.xlu0 %1184, %v1068
        %v1186 = vpop.permute.xlu0 %1185
        %1187 = vset.pattern.permute.xlu0 1
        %1188 = vperm.xlu0 %1187, %v1069
        %v1189 = vpop.permute.xlu0 %1188
        %1190 = vset.pattern.permute.xlu0 1
        %1191 = vperm.xlu0 %1190, %v1070
        %v1192 = vpop.permute.xlu0 %1191
        %1193 = vset.pattern.permute.xlu0 1
        %1194 = vperm.xlu0 %1193, %v1071
        %v1195 = vpop.permute.xlu0 %1194
        %1196 = vset.pattern.permute.xlu0 1
        %1197 = vperm.xlu0 %1196, %v1072
        %v1198 = vpop.permute.xlu0 %1197
        %1199 = vset.pattern.permute.xlu0 1
        %1200 = vperm.xlu0 %1199, %v1073
        %v1201 = vpop.permute.xlu0 %1200
        %1202 = vset.pattern.permute.xlu0 1
        %1203 = vperm.xlu0 %1202, %v1074
        %v1204 = vpop.permute.xlu0 %1203
        %1205 = vset.pattern.permute.xlu0 1
        %1206 = vperm.xlu0 %1205, %v1075
        %v1207 = vpop.permute.xlu0 %1206
        %1208 = vset.pattern.permute.xlu0 1
        %1209 = vperm.xlu0 %1208, %v1076
        %v1210 = vpop.permute.xlu0 %1209
        %1211 = vset.pattern.permute.xlu0 1
        %1212 = vperm.xlu0 %1211, %v1077
        %v1213 = vpop.permute.xlu0 %1212
        %1214 = vset.pattern.permute.xlu0 1
        %1215 = vperm.xlu0 %1214, %v1078
        %v1216 = vpop.permute.xlu0 %1215
        %1217 = vset.pattern.permute.xlu0 1
        %1218 = vperm.xlu0 %1217, %v1079
        %v1219 = vpop.permute.xlu0 %1218
        %1220 = vset.pattern.permute.xlu0 1
        %1221 = vperm.xlu0 %1220, %v1080
        %v1222 = vpop.permute.xlu0 %1221
        %1223 = vset.pattern.permute.xlu0 1
        %1224 = vperm.xlu0 %1223, %v1081
        %v1225 = vpop.permute.xlu0 %1224
        %vm1226 = vcmp.eq.s32.totalorder %v263, %v1180
        %vm1227 = vcmp.eq.s32.totalorder %v263, %v1183
        %vm1228 = vcmp.eq.s32.totalorder %v263, %v1186
        %vm1229 = vcmp.eq.s32.totalorder %v263, %v1189
        %vm1230 = vcmp.eq.s32.totalorder %v263, %v1192
        %vm1231 = vcmp.eq.s32.totalorder %v263, %v1195
        %vm1232 = vcmp.eq.s32.totalorder %v263, %v1198
        %vm1233 = vcmp.eq.s32.totalorder %v263, %v1201
        %vm1234 = vcmp.eq.s32.totalorder %v263, %v1204
        %vm1235 = vcmp.eq.s32.totalorder %v263, %v1207
        %vm1236 = vcmp.eq.s32.totalorder %v263, %v1210
        %vm1237 = vcmp.eq.s32.totalorder %v263, %v1213
        %vm1238 = vcmp.eq.s32.totalorder %v263, %v1216
        %vm1239 = vcmp.eq.s32.totalorder %v263, %v1219
        %vm1240 = vcmp.eq.s32.totalorder %v263, %v1222
        %vm1241 = vcmp.eq.s32.totalorder %v263, %v1225
        %v1242 = vsel %vm1226, 1, 0
        %v1243 = vsel %vm1227, 1, 0
        %v1244 = vsel %vm1228, 1, 0
        %v1245 = vsel %vm1229, 1, 0
        %v1246 = vsel %vm1230, 1, 0
        %v1247 = vsel %vm1231, 1, 0
        %v1248 = vsel %vm1232, 1, 0
        %v1249 = vsel %vm1233, 1, 0
        %v1250 = vsel %vm1234, 1, 0
        %v1251 = vsel %vm1235, 1, 0
        %v1252 = vsel %vm1236, 1, 0
        %v1253 = vsel %vm1237, 1, 0
        %v1254 = vsel %vm1238, 1, 0
        %v1255 = vsel %vm1239, 1, 0
        %v1256 = vsel %vm1240, 1, 0
        %v1257 = vsel %vm1241, 1, 0
        %v1258 = vcvt.s32.f32 %v1242
        %v1259 = vcvt.s32.f32 %v1243
        %v1260 = vcvt.s32.f32 %v1244
        %v1261 = vcvt.s32.f32 %v1245
        %v1262 = vcvt.s32.f32 %v1246
        %v1263 = vcvt.s32.f32 %v1247
        %v1264 = vcvt.s32.f32 %v1248
        %v1265 = vcvt.s32.f32 %v1249
        %v1266 = vcvt.s32.f32 %v1250
        %v1267 = vcvt.s32.f32 %v1251
        %v1268 = vcvt.s32.f32 %v1252
        %v1269 = vcvt.s32.f32 %v1253
        %v1270 = vcvt.s32.f32 %v1254
        %v1271 = vcvt.s32.f32 %v1255
        %v1272 = vcvt.s32.f32 %v1256
        %v1273 = vcvt.s32.f32 %v1257
        %v1274 = vadd.f32 %v1162, %v1258
        %v1275 = vadd.f32 %v1163, %v1259
        %v1276 = vadd.f32 %v1164, %v1260
        %v1277 = vadd.f32 %v1165, %v1261
        %v1278 = vadd.f32 %v1166, %v1262
        %v1279 = vadd.f32 %v1167, %v1263
        %v1280 = vadd.f32 %v1168, %v1264
        %v1281 = vadd.f32 %v1169, %v1265
        %v1282 = vadd.f32 %v1170, %v1266
        %v1283 = vadd.f32 %v1171, %v1267
        %v1284 = vadd.f32 %v1172, %v1268
        %v1285 = vadd.f32 %v1173, %v1269
        %v1286 = vadd.f32 %v1174, %v1270
        %v1287 = vadd.f32 %v1175, %v1271
        %v1288 = vadd.f32 %v1176, %v1272
        %v1289 = vadd.f32 %v1177, %v1273
        %1290 = vset.pattern.permute.xlu0 2
        %1291 = vperm.xlu0 %1290, %v1066
        %v1292 = vpop.permute.xlu0 %1291
        %1293 = vset.pattern.permute.xlu0 2
        %1294 = vperm.xlu0 %1293, %v1067
        %v1295 = vpop.permute.xlu0 %1294
        %1296 = vset.pattern.permute.xlu0 2
        %1297 = vperm.xlu0 %1296, %v1068
        %v1298 = vpop.permute.xlu0 %1297
        %1299 = vset.pattern.permute.xlu0 2
        %1300 = vperm.xlu0 %1299, %v1069
        %v1301 = vpop.permute.xlu0 %1300
        %1302 = vset.pattern.permute.xlu0 2
        %1303 = vperm.xlu0 %1302, %v1070
        %v1304 = vpop.permute.xlu0 %1303
        %1305 = vset.pattern.permute.xlu0 2
        %1306 = vperm.xlu0 %1305, %v1071
        %v1307 = vpop.permute.xlu0 %1306
        %1308 = vset.pattern.permute.xlu0 2
        %1309 = vperm.xlu0 %1308, %v1072
        %v1310 = vpop.permute.xlu0 %1309
        %1311 = vset.pattern.permute.xlu0 2
        %1312 = vperm.xlu0 %1311, %v1073
        %v1313 = vpop.permute.xlu0 %1312
        %1314 = vset.pattern.permute.xlu0 2
        %1315 = vperm.xlu0 %1314, %v1074
        %v1316 = vpop.permute.xlu0 %1315
        %1317 = vset.pattern.permute.xlu0 2
        %1318 = vperm.xlu0 %1317, %v1075
        %v1319 = vpop.permute.xlu0 %1318
        %1320 = vset.pattern.permute.xlu0 2
        %1321 = vperm.xlu0 %1320, %v1076
        %v1322 = vpop.permute.xlu0 %1321
        %1323 = vset.pattern.permute.xlu0 2
        %1324 = vperm.xlu0 %1323, %v1077
        %v1325 = vpop.permute.xlu0 %1324
        %1326 = vset.pattern.permute.xlu0 2
        %1327 = vperm.xlu0 %1326, %v1078
        %v1328 = vpop.permute.xlu0 %1327
        %1329 = vset.pattern.permute.xlu0 2
        %1330 = vperm.xlu0 %1329, %v1079
        %v1331 = vpop.permute.xlu0 %1330
        %1332 = vset.pattern.permute.xlu0 2
        %1333 = vperm.xlu0 %1332, %v1080
        %v1334 = vpop.permute.xlu0 %1333
        %1335 = vset.pattern.permute.xlu0 2
        %1336 = vperm.xlu0 %1335, %v1081
        %v1337 = vpop.permute.xlu0 %1336
        %vm1338 = vcmp.eq.s32.totalorder %v263, %v1292
        %vm1339 = vcmp.eq.s32.totalorder %v263, %v1295
        %vm1340 = vcmp.eq.s32.totalorder %v263, %v1298
        %vm1341 = vcmp.eq.s32.totalorder %v263, %v1301
        %vm1342 = vcmp.eq.s32.totalorder %v263, %v1304
        %vm1343 = vcmp.eq.s32.totalorder %v263, %v1307
        %vm1344 = vcmp.eq.s32.totalorder %v263, %v1310
        %vm1345 = vcmp.eq.s32.totalorder %v263, %v1313
        %vm1346 = vcmp.eq.s32.totalorder %v263, %v1316
        %vm1347 = vcmp.eq.s32.totalorder %v263, %v1319
        %vm1348 = vcmp.eq.s32.totalorder %v263, %v1322
        %vm1349 = vcmp.eq.s32.totalorder %v263, %v1325
        %vm1350 = vcmp.eq.s32.totalorder %v263, %v1328
        %vm1351 = vcmp.eq.s32.totalorder %v263, %v1331
        %vm1352 = vcmp.eq.s32.totalorder %v263, %v1334
        %vm1353 = vcmp.eq.s32.totalorder %v263, %v1337
        %v1354 = vsel %vm1338, 1, 0
        %v1355 = vsel %vm1339, 1, 0
        %v1356 = vsel %vm1340, 1, 0
        %v1357 = vsel %vm1341, 1, 0
        %v1358 = vsel %vm1342, 1, 0
        %v1359 = vsel %vm1343, 1, 0
        %v1360 = vsel %vm1344, 1, 0
        %v1361 = vsel %vm1345, 1, 0
        %v1362 = vsel %vm1346, 1, 0
        %v1363 = vsel %vm1347, 1, 0
        %v1364 = vsel %vm1348, 1, 0
        %v1365 = vsel %vm1349, 1, 0
        %v1366 = vsel %vm1350, 1, 0
        %v1367 = vsel %vm1351, 1, 0
        %v1368 = vsel %vm1352, 1, 0
        %v1369 = vsel %vm1353, 1, 0
        %v1370 = vcvt.s32.f32 %v1354
        %v1371 = vcvt.s32.f32 %v1355
        %v1372 = vcvt.s32.f32 %v1356
        %v1373 = vcvt.s32.f32 %v1357
        %v1374 = vcvt.s32.f32 %v1358
        %v1375 = vcvt.s32.f32 %v1359
        %v1376 = vcvt.s32.f32 %v1360
        %v1377 = vcvt.s32.f32 %v1361
        %v1378 = vcvt.s32.f32 %v1362
        %v1379 = vcvt.s32.f32 %v1363
        %v1380 = vcvt.s32.f32 %v1364
        %v1381 = vcvt.s32.f32 %v1365
        %v1382 = vcvt.s32.f32 %v1366
        %v1383 = vcvt.s32.f32 %v1367
        %v1384 = vcvt.s32.f32 %v1368
        %v1385 = vcvt.s32.f32 %v1369
        %v1386 = vadd.f32 %v1274, %v1370
        %v1387 = vadd.f32 %v1275, %v1371
        %v1388 = vadd.f32 %v1276, %v1372
        %v1389 = vadd.f32 %v1277, %v1373
        %v1390 = vadd.f32 %v1278, %v1374
        %v1391 = vadd.f32 %v1279, %v1375
        %v1392 = vadd.f32 %v1280, %v1376
        %v1393 = vadd.f32 %v1281, %v1377
        %v1394 = vadd.f32 %v1282, %v1378
        %v1395 = vadd.f32 %v1283, %v1379
        %v1396 = vadd.f32 %v1284, %v1380
        %v1397 = vadd.f32 %v1285, %v1381
        %v1398 = vadd.f32 %v1286, %v1382
        %v1399 = vadd.f32 %v1287, %v1383
        %v1400 = vadd.f32 %v1288, %v1384
        %v1401 = vadd.f32 %v1289, %v1385
        %1402 = vset.pattern.permute.xlu0 3
        %1403 = vperm.xlu0 %1402, %v1066
        %v1404 = vpop.permute.xlu0 %1403
        %1405 = vset.pattern.permute.xlu0 3
        %1406 = vperm.xlu0 %1405, %v1067
        %v1407 = vpop.permute.xlu0 %1406
        %1408 = vset.pattern.permute.xlu0 3
        %1409 = vperm.xlu0 %1408, %v1068
        %v1410 = vpop.permute.xlu0 %1409
        %1411 = vset.pattern.permute.xlu0 3
        %1412 = vperm.xlu0 %1411, %v1069
        %v1413 = vpop.permute.xlu0 %1412
        %1414 = vset.pattern.permute.xlu0 3
        %1415 = vperm.xlu0 %1414, %v1070
        %v1416 = vpop.permute.xlu0 %1415
        %1417 = vset.pattern.permute.xlu0 3
        %1418 = vperm.xlu0 %1417, %v1071
        %v1419 = vpop.permute.xlu0 %1418
        %1420 = vset.pattern.permute.xlu0 3
        %1421 = vperm.xlu0 %1420, %v1072
        %v1422 = vpop.permute.xlu0 %1421
        %1423 = vset.pattern.permute.xlu0 3
        %1424 = vperm.xlu0 %1423, %v1073
        %v1425 = vpop.permute.xlu0 %1424
        %1426 = vset.pattern.permute.xlu0 3
        %1427 = vperm.xlu0 %1426, %v1074
        %v1428 = vpop.permute.xlu0 %1427
        %1429 = vset.pattern.permute.xlu0 3
        %1430 = vperm.xlu0 %1429, %v1075
        %v1431 = vpop.permute.xlu0 %1430
        %1432 = vset.pattern.permute.xlu0 3
        %1433 = vperm.xlu0 %1432, %v1076
        %v1434 = vpop.permute.xlu0 %1433
        %1435 = vset.pattern.permute.xlu0 3
        %1436 = vperm.xlu0 %1435, %v1077
        %v1437 = vpop.permute.xlu0 %1436
        %1438 = vset.pattern.permute.xlu0 3
        %1439 = vperm.xlu0 %1438, %v1078
        %v1440 = vpop.permute.xlu0 %1439
        %1441 = vset.pattern.permute.xlu0 3
        %1442 = vperm.xlu0 %1441, %v1079
        %v1443 = vpop.permute.xlu0 %1442
        %1444 = vset.pattern.permute.xlu0 3
        %1445 = vperm.xlu0 %1444, %v1080
        %v1446 = vpop.permute.xlu0 %1445
        %1447 = vset.pattern.permute.xlu0 3
        %1448 = vperm.xlu0 %1447, %v1081
        %v1449 = vpop.permute.xlu0 %1448
        %vm1450 = vcmp.eq.s32.totalorder %v263, %v1404
        %vm1451 = vcmp.eq.s32.totalorder %v263, %v1407
        %vm1452 = vcmp.eq.s32.totalorder %v263, %v1410
        %vm1453 = vcmp.eq.s32.totalorder %v263, %v1413
        %vm1454 = vcmp.eq.s32.totalorder %v263, %v1416
        %vm1455 = vcmp.eq.s32.totalorder %v263, %v1419
        %vm1456 = vcmp.eq.s32.totalorder %v263, %v1422
        %vm1457 = vcmp.eq.s32.totalorder %v263, %v1425
        %vm1458 = vcmp.eq.s32.totalorder %v263, %v1428
        %vm1459 = vcmp.eq.s32.totalorder %v263, %v1431
        %vm1460 = vcmp.eq.s32.totalorder %v263, %v1434
        %vm1461 = vcmp.eq.s32.totalorder %v263, %v1437
        %vm1462 = vcmp.eq.s32.totalorder %v263, %v1440
        %vm1463 = vcmp.eq.s32.totalorder %v263, %v1443
        %vm1464 = vcmp.eq.s32.totalorder %v263, %v1446
        %vm1465 = vcmp.eq.s32.totalorder %v263, %v1449
        %v1466 = vsel %vm1450, 1, 0
        %v1467 = vsel %vm1451, 1, 0
        %v1468 = vsel %vm1452, 1, 0
        %v1469 = vsel %vm1453, 1, 0
        %v1470 = vsel %vm1454, 1, 0
        %v1471 = vsel %vm1455, 1, 0
        %v1472 = vsel %vm1456, 1, 0
        %v1473 = vsel %vm1457, 1, 0
        %v1474 = vsel %vm1458, 1, 0
        %v1475 = vsel %vm1459, 1, 0
        %v1476 = vsel %vm1460, 1, 0
        %v1477 = vsel %vm1461, 1, 0
        %v1478 = vsel %vm1462, 1, 0
        %v1479 = vsel %vm1463, 1, 0
        %v1480 = vsel %vm1464, 1, 0
        %v1481 = vsel %vm1465, 1, 0
        %v1482 = vcvt.s32.f32 %v1466
        %v1483 = vcvt.s32.f32 %v1467
        %v1484 = vcvt.s32.f32 %v1468
        %v1485 = vcvt.s32.f32 %v1469
        %v1486 = vcvt.s32.f32 %v1470
        %v1487 = vcvt.s32.f32 %v1471
        %v1488 = vcvt.s32.f32 %v1472
        %v1489 = vcvt.s32.f32 %v1473
        %v1490 = vcvt.s32.f32 %v1474
        %v1491 = vcvt.s32.f32 %v1475
        %v1492 = vcvt.s32.f32 %v1476
        %v1493 = vcvt.s32.f32 %v1477
        %v1494 = vcvt.s32.f32 %v1478
        %v1495 = vcvt.s32.f32 %v1479
        %v1496 = vcvt.s32.f32 %v1480
        %v1497 = vcvt.s32.f32 %v1481
        %v1498 = vadd.f32 %v1386, %v1482
        %v1499 = vadd.f32 %v1387, %v1483
        %v1500 = vadd.f32 %v1388, %v1484
        %v1501 = vadd.f32 %v1389, %v1485
        %v1502 = vadd.f32 %v1390, %v1486
        %v1503 = vadd.f32 %v1391, %v1487
        %v1504 = vadd.f32 %v1392, %v1488
        %v1505 = vadd.f32 %v1393, %v1489
        %v1506 = vadd.f32 %v1394, %v1490
        %v1507 = vadd.f32 %v1395, %v1491
        %v1508 = vadd.f32 %v1396, %v1492
        %v1509 = vadd.f32 %v1397, %v1493
        %v1510 = vadd.f32 %v1398, %v1494
        %v1511 = vadd.f32 %v1399, %v1495
        %v1512 = vadd.f32 %v1400, %v1496
        %v1513 = vadd.f32 %v1401, %v1497
        %1514 = vset.pattern.permute.xlu0 4
        %1515 = vperm.xlu0 %1514, %v1066
        %v1516 = vpop.permute.xlu0 %1515
        %1517 = vset.pattern.permute.xlu0 4
        %1518 = vperm.xlu0 %1517, %v1067
        %v1519 = vpop.permute.xlu0 %1518
        %1520 = vset.pattern.permute.xlu0 4
        %1521 = vperm.xlu0 %1520, %v1068
        %v1522 = vpop.permute.xlu0 %1521
        %1523 = vset.pattern.permute.xlu0 4
        %1524 = vperm.xlu0 %1523, %v1069
        %v1525 = vpop.permute.xlu0 %1524
        %1526 = vset.pattern.permute.xlu0 4
        %1527 = vperm.xlu0 %1526, %v1070
        %v1528 = vpop.permute.xlu0 %1527
        %1529 = vset.pattern.permute.xlu0 4
        %1530 = vperm.xlu0 %1529, %v1071
        %v1531 = vpop.permute.xlu0 %1530
        %1532 = vset.pattern.permute.xlu0 4
        %1533 = vperm.xlu0 %1532, %v1072
        %v1534 = vpop.permute.xlu0 %1533
        %1535 = vset.pattern.permute.xlu0 4
        %1536 = vperm.xlu0 %1535, %v1073
        %v1537 = vpop.permute.xlu0 %1536
        %1538 = vset.pattern.permute.xlu0 4
        %1539 = vperm.xlu0 %1538, %v1074
        %v1540 = vpop.permute.xlu0 %1539
        %1541 = vset.pattern.permute.xlu0 4
        %1542 = vperm.xlu0 %1541, %v1075
        %v1543 = vpop.permute.xlu0 %1542
        %1544 = vset.pattern.permute.xlu0 4
        %1545 = vperm.xlu0 %1544, %v1076
        %v1546 = vpop.permute.xlu0 %1545
        %1547 = vset.pattern.permute.xlu0 4
        %1548 = vperm.xlu0 %1547, %v1077
        %v1549 = vpop.permute.xlu0 %1548
        %1550 = vset.pattern.permute.xlu0 4
        %1551 = vperm.xlu0 %1550, %v1078
        %v1552 = vpop.permute.xlu0 %1551
        %1553 = vset.pattern.permute.xlu0 4
        %1554 = vperm.xlu0 %1553, %v1079
        %v1555 = vpop.permute.xlu0 %1554
        %1556 = vset.pattern.permute.xlu0 4
        %1557 = vperm.xlu0 %1556, %v1080
        %v1558 = vpop.permute.xlu0 %1557
        %1559 = vset.pattern.permute.xlu0 4
        %1560 = vperm.xlu0 %1559, %v1081
        %v1561 = vpop.permute.xlu0 %1560
        %vm1562 = vcmp.eq.s32.totalorder %v263, %v1516
        %vm1563 = vcmp.eq.s32.totalorder %v263, %v1519
        %vm1564 = vcmp.eq.s32.totalorder %v263, %v1522
        %vm1565 = vcmp.eq.s32.totalorder %v263, %v1525
        %vm1566 = vcmp.eq.s32.totalorder %v263, %v1528
        %vm1567 = vcmp.eq.s32.totalorder %v263, %v1531
        %vm1568 = vcmp.eq.s32.totalorder %v263, %v1534
        %vm1569 = vcmp.eq.s32.totalorder %v263, %v1537
        %vm1570 = vcmp.eq.s32.totalorder %v263, %v1540
        %vm1571 = vcmp.eq.s32.totalorder %v263, %v1543
        %vm1572 = vcmp.eq.s32.totalorder %v263, %v1546
        %vm1573 = vcmp.eq.s32.totalorder %v263, %v1549
        %vm1574 = vcmp.eq.s32.totalorder %v263, %v1552
        %vm1575 = vcmp.eq.s32.totalorder %v263, %v1555
        %vm1576 = vcmp.eq.s32.totalorder %v263, %v1558
        %vm1577 = vcmp.eq.s32.totalorder %v263, %v1561
        %v1578 = vsel %vm1562, 1, 0
        %v1579 = vsel %vm1563, 1, 0
        %v1580 = vsel %vm1564, 1, 0
        %v1581 = vsel %vm1565, 1, 0
        %v1582 = vsel %vm1566, 1, 0
        %v1583 = vsel %vm1567, 1, 0
        %v1584 = vsel %vm1568, 1, 0
        %v1585 = vsel %vm1569, 1, 0
        %v1586 = vsel %vm1570, 1, 0
        %v1587 = vsel %vm1571, 1, 0
        %v1588 = vsel %vm1572, 1, 0
        %v1589 = vsel %vm1573, 1, 0
        %v1590 = vsel %vm1574, 1, 0
        %v1591 = vsel %vm1575, 1, 0
        %v1592 = vsel %vm1576, 1, 0
        %v1593 = vsel %vm1577, 1, 0
        %v1594 = vcvt.s32.f32 %v1578
        %v1595 = vcvt.s32.f32 %v1579
        %v1596 = vcvt.s32.f32 %v1580
        %v1597 = vcvt.s32.f32 %v1581
        %v1598 = vcvt.s32.f32 %v1582
        %v1599 = vcvt.s32.f32 %v1583
        %v1600 = vcvt.s32.f32 %v1584
        %v1601 = vcvt.s32.f32 %v1585
        %v1602 = vcvt.s32.f32 %v1586
        %v1603 = vcvt.s32.f32 %v1587
        %v1604 = vcvt.s32.f32 %v1588
        %v1605 = vcvt.s32.f32 %v1589
        %v1606 = vcvt.s32.f32 %v1590
        %v1607 = vcvt.s32.f32 %v1591
        %v1608 = vcvt.s32.f32 %v1592
        %v1609 = vcvt.s32.f32 %v1593
        %v1610 = vadd.f32 %v1498, %v1594
        %v1611 = vadd.f32 %v1499, %v1595
        %v1612 = vadd.f32 %v1500, %v1596
        %v1613 = vadd.f32 %v1501, %v1597
        %v1614 = vadd.f32 %v1502, %v1598
        %v1615 = vadd.f32 %v1503, %v1599
        %v1616 = vadd.f32 %v1504, %v1600
        %v1617 = vadd.f32 %v1505, %v1601
        %v1618 = vadd.f32 %v1506, %v1602
        %v1619 = vadd.f32 %v1507, %v1603
        %v1620 = vadd.f32 %v1508, %v1604
        %v1621 = vadd.f32 %v1509, %v1605
        %v1622 = vadd.f32 %v1510, %v1606
        %v1623 = vadd.f32 %v1511, %v1607
        %v1624 = vadd.f32 %v1512, %v1608
        %v1625 = vadd.f32 %v1513, %v1609
        %v1626 = vld [vmem:[#allocation4] sm:$0xff]
        %v1627 = vld [vmem:[#allocation4 + $0x8] sm:$0xff]
        %v1628 = vld [vmem:[#allocation4 + $0x10] sm:$0xff]
        %v1629 = vld [vmem:[#allocation4 + $0x18] sm:$0xff]
        %v1630 = vld [vmem:[#allocation4 + $0x20] sm:$0xff]
        %v1631 = vld [vmem:[#allocation4 + $0x28] sm:$0xff]
        %v1632 = vld [vmem:[#allocation4 + $0x30] sm:$0xff]
        %v1633 = vld [vmem:[#allocation4 + $0x38] sm:$0xff]
        %v1634 = vld [vmem:[#allocation4 + $0x40] sm:$0xff]
        %v1635 = vld [vmem:[#allocation4 + $0x48] sm:$0xff]
        %v1636 = vld [vmem:[#allocation4 + $0x50] sm:$0xff]
        %v1637 = vld [vmem:[#allocation4 + $0x58] sm:$0xff]
        %v1638 = vld [vmem:[#allocation4 + $0x60] sm:$0xff]
        %v1639 = vld [vmem:[#allocation4 + $0x68] sm:$0xff]
        %v1640 = vld [vmem:[#allocation4 + $0x70] sm:$0xff]
        %v1641 = vld [vmem:[#allocation4 + $0x78] sm:$0xff]
        %1642 = vmatpush.msra.mxu0 %v279
        %1643 = vmatpush.msra.mxu0 %v278
        %1644 = vmatpush.msra.mxu0 %v277
        %1645 = vmatpush.msra.mxu0 %v276
        %1646 = vmatpush.msra.mxu0 %v275
        %1647 = vmatpush.msra.mxu0 %v274
        %1648 = vmatpush.msra.mxu0 %v273
        %1649 = vmatpush.msra.mxu0 %v272
        %1650 = vmatpush.msra.mxu0 %v271
        %1651 = vmatpush.msra.mxu0 %v270
        %1652 = vmatpush.msra.mxu0 %v269
        %1653 = vmatpush.msra.mxu0 %v268
        %1654 = vmatpush.msra.mxu0 %v267
        %1655 = vmatpush.msra.mxu0 %v266
        %1656 = vmatpush.msra.mxu0 %v265
        %1657 = vmatpush.msra.mxu0 %v264
        %1658 = vmatmul.f32.gmra.mxu0 %v1610
        %v1659 = vpop.f32.mrf.mxu0
        %v1660 = vadd.f32 0.0, %v1659
        %1661 = vmatmul.f32.gmra.mxu0 %v1611
        %v1662 = vpop.f32.mrf.mxu0
        %v1663 = vadd.f32 0.0, %v1662
        %1664 = vmatmul.f32.gmra.mxu0 %v1612
        %v1665 = vpop.f32.mrf.mxu0
        %v1666 = vadd.f32 0.0, %v1665
        %1667 = vmatmul.f32.gmra.mxu0 %v1613
        %v1668 = vpop.f32.mrf.mxu0
        %v1669 = vadd.f32 0.0, %v1668
        %1670 = vmatmul.f32.gmra.mxu0 %v1614
        %v1671 = vpop.f32.mrf.mxu0
        %v1672 = vadd.f32 0.0, %v1671
        %1673 = vmatmul.f32.gmra.mxu0 %v1615
        %v1674 = vpop.f32.mrf.mxu0
        %v1675 = vadd.f32 0.0, %v1674
        %1676 = vmatmul.f32.gmra.mxu0 %v1616
        %v1677 = vpop.f32.mrf.mxu0
        %v1678 = vadd.f32 0.0, %v1677
        %1679 = vmatmul.f32.gmra.mxu0 %v1617
        %v1680 = vpop.f32.mrf.mxu0
        %v1681 = vadd.f32 0.0, %v1680
        %1682 = vmatmul.f32.gmra.mxu0 %v1618
        %v1683 = vpop.f32.mrf.mxu0
        %v1684 = vadd.f32 0.0, %v1683
        %1685 = vmatmul.f32.gmra.mxu0 %v1619
        %v1686 = vpop.f32.mrf.mxu0
        %v1687 = vadd.f32 0.0, %v1686
        %1688 = vmatmul.f32.gmra.mxu0 %v1620
        %v1689 = vpop.f32.mrf.mxu0
        %v1690 = vadd.f32 0.0, %v1689
        %1691 = vmatmul.f32.gmra.mxu0 %v1621
        %v1692 = vpop.f32.mrf.mxu0
        %v1693 = vadd.f32 0.0, %v1692
        %1694 = vmatmul.f32.gmra.mxu0 %v1622
        %v1695 = vpop.f32.mrf.mxu0
        %v1696 = vadd.f32 0.0, %v1695
        %1697 = vmatmul.f32.gmra.mxu0 %v1623
        %v1698 = vpop.f32.mrf.mxu0
        %v1699 = vadd.f32 0.0, %v1698
        %1700 = vmatmul.f32.gmra.mxu0 %v1624
        %v1701 = vpop.f32.mrf.mxu0
        %v1702 = vadd.f32 0.0, %v1701
        %1703 = vmatmul.f32.gmra.mxu0 %v1625
        %v1704 = vpop.f32.mrf.mxu0
        %v1705 = vadd.f32 0.0, %v1704
        %1706 = vdwg.mxu0
        %v1707 = vadd.f32 %v1626, %v1660
        %v1708 = vadd.f32 %v1627, %v1663
        %v1709 = vadd.f32 %v1628, %v1666
        %v1710 = vadd.f32 %v1629, %v1669
        %v1711 = vadd.f32 %v1630, %v1672
        %v1712 = vadd.f32 %v1631, %v1675
        %v1713 = vadd.f32 %v1632, %v1678
        %v1714 = vadd.f32 %v1633, %v1681
        %v1715 = vadd.f32 %v1634, %v1684
        %v1716 = vadd.f32 %v1635, %v1687
        %v1717 = vadd.f32 %v1636, %v1690
        %v1718 = vadd.f32 %v1637, %v1693
        %v1719 = vadd.f32 %v1638, %v1696
        %v1720 = vadd.f32 %v1639, %v1699
        %v1721 = vadd.f32 %v1640, %v1702
        %v1722 = vadd.f32 %v1641, %v1705
        %1723 = vst [vmem:[#allocation4] sm:$0xff] %v1707
        %1724 = vst [vmem:[#allocation4 + $0x8] sm:$0xff] %v1708
        %1725 = vst [vmem:[#allocation4 + $0x10] sm:$0xff] %v1709
        %1726 = vst [vmem:[#allocation4 + $0x18] sm:$0xff] %v1710
        %1727 = vst [vmem:[#allocation4 + $0x20] sm:$0xff] %v1711
        %1728 = vst [vmem:[#allocation4 + $0x28] sm:$0xff] %v1712
        %1729 = vst [vmem:[#allocation4 + $0x30] sm:$0xff] %v1713
        %1730 = vst [vmem:[#allocation4 + $0x38] sm:$0xff] %v1714
        %1731 = vst [vmem:[#allocation4 + $0x40] sm:$0xff] %v1715
        %1732 = vst [vmem:[#allocation4 + $0x48] sm:$0xff] %v1716
        %1733 = vst [vmem:[#allocation4 + $0x50] sm:$0xff] %v1717
        %1734 = vst [vmem:[#allocation4 + $0x58] sm:$0xff] %v1718
        %1735 = vst [vmem:[#allocation4 + $0x60] sm:$0xff] %v1719
        %1736 = vst [vmem:[#allocation4 + $0x68] sm:$0xff] %v1720
        %1737 = vst [vmem:[#allocation4 + $0x70] sm:$0xff] %v1721
        %1738 = vst [vmem:[#allocation4 + $0x78] sm:$0xff] %v1722
        %p1739 = scmp.eq.s32.totalorder %s19, 3
        // Predicated region
        $region45: #{skip_gram_loss.1} parent=35 // pred_check
          %p1740 = pneg %p1739
        $region46: #{skip_gram_loss.1} parent=35 // pred_check_branch
          %1742 = sbr.rel (%p1740) target = $region48
        $region47: #{skip_gram_loss.1} parent=35 // pred_region
          %v1743 = vld [vmem:[#allocation2] sm:$0xff]
          %v1744 = vld [vmem:[#allocation2 + $0x8] sm:$0xff]
          %v1745 = vld [vmem:[#allocation2 + $0x10] sm:$0xff]
          %v1746 = vld [vmem:[#allocation2 + $0x18] sm:$0xff]
          %v1747 = vld [vmem:[#allocation2 + $0x20] sm:$0xff]
          %v1748 = vld [vmem:[#allocation2 + $0x28] sm:$0xff]
          %v1749 = vld [vmem:[#allocation2 + $0x30] sm:$0xff]
          %v1750 = vld [vmem:[#allocation2 + $0x38] sm:$0xff]
          %v1751 = vld [vmem:[#allocation2 + $0x40] sm:$0xff]
          %v1752 = vld [vmem:[#allocation2 + $0x48] sm:$0xff]
          %v1753 = vld [vmem:[#allocation2 + $0x50] sm:$0xff]
          %v1754 = vld [vmem:[#allocation2 + $0x58] sm:$0xff]
          %v1755 = vld [vmem:[#allocation2 + $0x60] sm:$0xff]
          %v1756 = vld [vmem:[#allocation2 + $0x68] sm:$0xff]
          %v1757 = vld [vmem:[#allocation2 + $0x70] sm:$0xff]
          %v1758 = vld [vmem:[#allocation2 + $0x78] sm:$0xff]
          %v1759 = vld [vmem:[#allocation3] sm:$0xff]
          %v1760 = vld [vmem:[#allocation3 + $0x8] sm:$0xff]
          %v1761 = vld [vmem:[#allocation3 + $0x10] sm:$0xff]
          %v1762 = vld [vmem:[#allocation3 + $0x18] sm:$0xff]
          %v1763 = vld [vmem:[#allocation3 + $0x20] sm:$0xff]
          %v1764 = vld [vmem:[#allocation3 + $0x28] sm:$0xff]
          %v1765 = vld [vmem:[#allocation3 + $0x30] sm:$0xff]
          %v1766 = vld [vmem:[#allocation3 + $0x38] sm:$0xff]
          %v1767 = vld [vmem:[#allocation3 + $0x40] sm:$0xff]
          %v1768 = vld [vmem:[#allocation3 + $0x48] sm:$0xff]
          %v1769 = vld [vmem:[#allocation3 + $0x50] sm:$0xff]
          %v1770 = vld [vmem:[#allocation3 + $0x58] sm:$0xff]
          %v1771 = vld [vmem:[#allocation3 + $0x60] sm:$0xff]
          %v1772 = vld [vmem:[#allocation3 + $0x68] sm:$0xff]
          %v1773 = vld [vmem:[#allocation3 + $0x70] sm:$0xff]
          %v1774 = vld [vmem:[#allocation3 + $0x78] sm:$0xff]
          %1775 = vxpose.xlu0.b32.start [1/16] %v1759, 128
          %1776 = vxpose.xlu0.b32.cont [2/16] %v1760, 128
          %1777 = vxpose.xlu0.b32.cont [3/16] %v1761, 128
          %1778 = vxpose.xlu0.b32.cont [4/16] %v1762, 128
          %1779 = vxpose.xlu0.b32.cont [5/16] %v1763, 128
          %1780 = vxpose.xlu0.b32.cont [6/16] %v1764, 128
          %1781 = vxpose.xlu0.b32.cont [7/16] %v1765, 128
          %1782 = vxpose.xlu0.b32.cont [8/16] %v1766, 128
          %1783 = vxpose.xlu0.b32.cont [9/16] %v1767, 128
          %1784 = vxpose.xlu0.b32.cont [10/16] %v1768, 128
          %1785 = vxpose.xlu0.b32.cont [11/16] %v1769, 128
          %1786 = vxpose.xlu0.b32.cont [12/16] %v1770, 128
          %1787 = vxpose.xlu0.b32.cont [13/16] %v1771, 128
          %1788 = vxpose.xlu0.b32.cont [14/16] %v1772, 128
          %1789 = vxpose.xlu0.b32.cont [15/16] %v1773, 128
          %1790 = vxpose.xlu0.b32.end [16/16] %v1774, 128
          %v1791 = vpop.trf.xlu0
          %v1792 = vpop.trf.xlu0
          %v1793 = vpop.trf.xlu0
          %v1794 = vpop.trf.xlu0
          %v1795 = vpop.trf.xlu0
          %v1796 = vpop.trf.xlu0
          %v1797 = vpop.trf.xlu0
          %v1798 = vpop.trf.xlu0
          %v1799 = vpop.trf.xlu0
          %v1800 = vpop.trf.xlu0
          %v1801 = vpop.trf.xlu0
          %v1802 = vpop.trf.xlu0
          %v1803 = vpop.trf.xlu0
          %v1804 = vpop.trf.xlu0
          %v1805 = vpop.trf.xlu0
          %v1806 = vpop.trf.xlu0
          %v1807 = vmul.f32 %v1791, 0.25
          %v1808 = vmul.f32 %v1792, 0.25
          %v1809 = vmul.f32 %v1793, 0.25
          %v1810 = vmul.f32 %v1794, 0.25
          %v1811 = vmul.f32 %v1795, 0.25
          %v1812 = vmul.f32 %v1796, 0.25
          %v1813 = vmul.f32 %v1797, 0.25
          %v1814 = vmul.f32 %v1798, 0.25
          %v1815 = vmul.f32 %v1799, 0.25
          %v1816 = vmul.f32 %v1800, 0.25
          %v1817 = vmul.f32 %v1801, 0.25
          %v1818 = vmul.f32 %v1802, 0.25
          %v1819 = vmul.f32 %v1803, 0.25
          %v1820 = vmul.f32 %v1804, 0.25
          %v1821 = vmul.f32 %v1805, 0.25
          %v1822 = vmul.f32 %v1806, 0.25
          %v1823 = vld [vmem:[#allocation4] sm:$0xff]
          %v1824 = vld [vmem:[#allocation4 + $0x8] sm:$0xff]
          %v1825 = vld [vmem:[#allocation4 + $0x10] sm:$0xff]
          %v1826 = vld [vmem:[#allocation4 + $0x18] sm:$0xff]
          %v1827 = vld [vmem:[#allocation4 + $0x20] sm:$0xff]
          %v1828 = vld [vmem:[#allocation4 + $0x28] sm:$0xff]
          %v1829 = vld [vmem:[#allocation4 + $0x30] sm:$0xff]
          %v1830 = vld [vmem:[#allocation4 + $0x38] sm:$0xff]
          %v1831 = vld [vmem:[#allocation4 + $0x40] sm:$0xff]
          %v1832 = vld [vmem:[#allocation4 + $0x48] sm:$0xff]
          %v1833 = vld [vmem:[#allocation4 + $0x50] sm:$0xff]
          %v1834 = vld [vmem:[#allocation4 + $0x58] sm:$0xff]
          %v1835 = vld [vmem:[#allocation4 + $0x60] sm:$0xff]
          %v1836 = vld [vmem:[#allocation4 + $0x68] sm:$0xff]
          %v1837 = vld [vmem:[#allocation4 + $0x70] sm:$0xff]
          %v1838 = vld [vmem:[#allocation4 + $0x78] sm:$0xff]
          %v1839 = vmul.f32 %v1823, 0.2
          %v1840 = vmul.f32 %v1824, 0.2
          %v1841 = vmul.f32 %v1825, 0.2
          %v1842 = vmul.f32 %v1826, 0.2
          %v1843 = vmul.f32 %v1827, 0.2
          %v1844 = vmul.f32 %v1828, 0.2
          %v1845 = vmul.f32 %v1829, 0.2
          %v1846 = vmul.f32 %v1830, 0.2
          %v1847 = vmul.f32 %v1831, 0.2
          %v1848 = vmul.f32 %v1832, 0.2
          %v1849 = vmul.f32 %v1833, 0.2
          %v1850 = vmul.f32 %v1834, 0.2
          %v1851 = vmul.f32 %v1835, 0.2
          %v1852 = vmul.f32 %v1836, 0.2
          %v1853 = vmul.f32 %v1837, 0.2
          %v1854 = vmul.f32 %v1838, 0.2
          %v1855 = vmul.f32 %v1743, %v1807
          %v1856 = vmul.f32 %v1744, %v1808
          %v1857 = vmul.f32 %v1745, %v1809
          %v1858 = vmul.f32 %v1746, %v1810
          %v1859 = vmul.f32 %v1747, %v1811
          %v1860 = vmul.f32 %v1748, %v1812
          %v1861 = vmul.f32 %v1749, %v1813
          %v1862 = vmul.f32 %v1750, %v1814
          %v1863 = vmul.f32 %v1751, %v1815
          %v1864 = vmul.f32 %v1752, %v1816
          %v1865 = vmul.f32 %v1753, %v1817
          %v1866 = vmul.f32 %v1754, %v1818
          %v1867 = vmul.f32 %v1755, %v1819
          %v1868 = vmul.f32 %v1756, %v1820
          %v1869 = vmul.f32 %v1757, %v1821
          %v1870 = vmul.f32 %v1758, %v1822
          %1871 = vadd.xlane.f32.xlu0 %v1855
          %v1872 = vpop.xlane.xlu0 %1871
          %1873 = vadd.xlane.f32.xlu0 %v1856
          %v1874 = vpop.xlane.xlu0 %1873
          %1875 = vadd.xlane.f32.xlu0 %v1857
          %v1876 = vpop.xlane.xlu0 %1875
          %1877 = vadd.xlane.f32.xlu0 %v1858
          %v1878 = vpop.xlane.xlu0 %1877
          %1879 = vadd.xlane.f32.xlu0 %v1859
          %v1880 = vpop.xlane.xlu0 %1879
          %1881 = vadd.xlane.f32.xlu0 %v1860
          %v1882 = vpop.xlane.xlu0 %1881
          %1883 = vadd.xlane.f32.xlu0 %v1861
          %v1884 = vpop.xlane.xlu0 %1883
          %1885 = vadd.xlane.f32.xlu0 %v1862
          %v1886 = vpop.xlane.xlu0 %1885
          %1887 = vadd.xlane.f32.xlu0 %v1863
          %v1888 = vpop.xlane.xlu0 %1887
          %1889 = vadd.xlane.f32.xlu0 %v1864
          %v1890 = vpop.xlane.xlu0 %1889
          %1891 = vadd.xlane.f32.xlu0 %v1865
          %v1892 = vpop.xlane.xlu0 %1891
          %1893 = vadd.xlane.f32.xlu0 %v1866
          %v1894 = vpop.xlane.xlu0 %1893
          %1895 = vadd.xlane.f32.xlu0 %v1867
          %v1896 = vpop.xlane.xlu0 %1895
          %1897 = vadd.xlane.f32.xlu0 %v1868
          %v1898 = vpop.xlane.xlu0 %1897
          %1899 = vadd.xlane.f32.xlu0 %v1869
          %v1900 = vpop.xlane.xlu0 %1899
          %1901 = vadd.xlane.f32.xlu0 %v1870
          %v1902 = vpop.xlane.xlu0 %1901
          %v1903 = vmul.f32 %v1743, %v1839
          %v1904 = vmul.f32 %v1744, %v1840
          %v1905 = vmul.f32 %v1745, %v1841
          %v1906 = vmul.f32 %v1746, %v1842
          %v1907 = vmul.f32 %v1747, %v1843
          %v1908 = vmul.f32 %v1748, %v1844
          %v1909 = vmul.f32 %v1749, %v1845
          %v1910 = vmul.f32 %v1750, %v1846
          %v1911 = vmul.f32 %v1751, %v1847
          %v1912 = vmul.f32 %v1752, %v1848
          %v1913 = vmul.f32 %v1753, %v1849
          %v1914 = vmul.f32 %v1754, %v1850
          %v1915 = vmul.f32 %v1755, %v1851
          %v1916 = vmul.f32 %v1756, %v1852
          %v1917 = vmul.f32 %v1757, %v1853
          %v1918 = vmul.f32 %v1758, %v1854
          %1919 = vadd.xlane.f32.xlu0 %v1903
          %v1920 = vpop.xlane.xlu0 %1919
          %1921 = vadd.xlane.f32.xlu0 %v1904
          %v1922 = vpop.xlane.xlu0 %1921
          %1923 = vadd.xlane.f32.xlu0 %v1905
          %v1924 = vpop.xlane.xlu0 %1923
          %1925 = vadd.xlane.f32.xlu0 %v1906
          %v1926 = vpop.xlane.xlu0 %1925
          %1927 = vadd.xlane.f32.xlu0 %v1907
          %v1928 = vpop.xlane.xlu0 %1927
          %1929 = vadd.xlane.f32.xlu0 %v1908
          %v1930 = vpop.xlane.xlu0 %1929
          %1931 = vadd.xlane.f32.xlu0 %v1909
          %v1932 = vpop.xlane.xlu0 %1931
          %1933 = vadd.xlane.f32.xlu0 %v1910
          %v1934 = vpop.xlane.xlu0 %1933
          %1935 = vadd.xlane.f32.xlu0 %v1911
          %v1936 = vpop.xlane.xlu0 %1935
          %1937 = vadd.xlane.f32.xlu0 %v1912
          %v1938 = vpop.xlane.xlu0 %1937
          %1939 = vadd.xlane.f32.xlu0 %v1913
          %v1940 = vpop.xlane.xlu0 %1939
          %1941 = vadd.xlane.f32.xlu0 %v1914
          %v1942 = vpop.xlane.xlu0 %1941
          %1943 = vadd.xlane.f32.xlu0 %v1915
          %v1944 = vpop.xlane.xlu0 %1943
          %1945 = vadd.xlane.f32.xlu0 %v1916
          %v1946 = vpop.xlane.xlu0 %1945
          %1947 = vadd.xlane.f32.xlu0 %v1917
          %v1948 = vpop.xlane.xlu0 %1947
          %1949 = vadd.xlane.f32.xlu0 %v1918
          %v1950 = vpop.xlane.xlu0 %1949
          %v1951 = vsub.f32 0.0, %v1872
          %v1952 = vsub.f32 0.0, %v1874
          %v1953 = vsub.f32 0.0, %v1876
          %v1954 = vsub.f32 0.0, %v1878
          %v1955 = vsub.f32 0.0, %v1880
          %v1956 = vsub.f32 0.0, %v1882
          %v1957 = vsub.f32 0.0, %v1884
          %v1958 = vsub.f32 0.0, %v1886
          %v1959 = vsub.f32 0.0, %v1888
          %v1960 = vsub.f32 0.0, %v1890
          %v1961 = vsub.f32 0.0, %v1892
          %v1962 = vsub.f32 0.0, %v1894
          %v1963 = vsub.f32 0.0, %v1896
          %v1964 = vsub.f32 0.0, %v1898
          %v1965 = vsub.f32 0.0, %v1900
          %v1966 = vsub.f32 0.0, %v1902
          %v1967 = vmax.f32 %v1951, 0.0
          %v1968 = vmax.f32 %v1952, 0.0
          %v1969 = vmax.f32 %v1953, 0.0
          %v1970 = vmax.f32 %v1954, 0.0
          %v1971 = vmax.f32 %v1955, 0.0
          %v1972 = vmax.f32 %v1956, 0.0
          %v1973 = vmax.f32 %v1957, 0.0
          %v1974 = vmax.f32 %v1958, 0.0
          %v1975 = vmax.f32 %v1959, 0.0
          %v1976 = vmax.f32 %v1960, 0.0
          %v1977 = vmax.f32 %v1961, 0.0
          %v1978 = vmax.f32 %v1962, 0.0
          %v1979 = vmax.f32 %v1963, 0.0
          %v1980 = vmax.f32 %v1964, 0.0
          %v1981 = vmax.f32 %v1965, 0.0
          %v1982 = vmax.f32 %v1966, 0.0
          %v1983 = vand.u32 2147483647, %v1951
          %v1984 = vand.u32 2147483647, %v1952
          %v1985 = vand.u32 2147483647, %v1953
          %v1986 = vand.u32 2147483647, %v1954
          %v1987 = vand.u32 2147483647, %v1955
          %v1988 = vand.u32 2147483647, %v1956
          %v1989 = vand.u32 2147483647, %v1957
          %v1990 = vand.u32 2147483647, %v1958
          %v1991 = vand.u32 2147483647, %v1959
          %v1992 = vand.u32 2147483647, %v1960
          %v1993 = vand.u32 2147483647, %v1961
          %v1994 = vand.u32 2147483647, %v1962
          %v1995 = vand.u32 2147483647, %v1963
          %v1996 = vand.u32 2147483647, %v1964
          %v1997 = vand.u32 2147483647, %v1965
          %v1998 = vand.u32 2147483647, %v1966
          %v1999 = vsub.f32 0.0, %v1983
          %v2000 = vsub.f32 0.0, %v1984
          %v2001 = vsub.f32 0.0, %v1985
          %v2002 = vsub.f32 0.0, %v1986
          %v2003 = vsub.f32 0.0, %v1987
          %v2004 = vsub.f32 0.0, %v1988
          %v2005 = vsub.f32 0.0, %v1989
          %v2006 = vsub.f32 0.0, %v1990
          %v2007 = vsub.f32 0.0, %v1991
          %v2008 = vsub.f32 0.0, %v1992
          %v2009 = vsub.f32 0.0, %v1993
          %v2010 = vsub.f32 0.0, %v1994
          %v2011 = vsub.f32 0.0, %v1995
          %v2012 = vsub.f32 0.0, %v1996
          %v2013 = vsub.f32 0.0, %v1997
          %v2014 = vsub.f32 0.0, %v1998
          %v2015 = vmul.f32 %v1999, 1.442695
          %v2016 = vpow.pop %v2015
          %v2017 = vmul.f32 %v2000, 1.442695
          %v2018 = vpow.pop %v2017
          %v2019 = vmul.f32 %v2001, 1.442695
          %v2020 = vpow.pop %v2019
          %v2021 = vmul.f32 %v2002, 1.442695
          %v2022 = vpow.pop %v2021
          %v2023 = vmul.f32 %v2003, 1.442695
          %v2024 = vpow.pop %v2023
          %v2025 = vmul.f32 %v2004, 1.442695
          %v2026 = vpow.pop %v2025
          %v2027 = vmul.f32 %v2005, 1.442695
          %v2028 = vpow.pop %v2027
          %v2029 = vmul.f32 %v2006, 1.442695
          %v2030 = vpow.pop %v2029
          %v2031 = vmul.f32 %v2007, 1.442695
          %v2032 = vpow.pop %v2031
          %v2033 = vmul.f32 %v2008, 1.442695
          %v2034 = vpow.pop %v2033
          %v2035 = vmul.f32 %v2009, 1.442695
          %v2036 = vpow.pop %v2035
          %v2037 = vmul.f32 %v2010, 1.442695
          %v2038 = vpow.pop %v2037
          %v2039 = vmul.f32 %v2011, 1.442695
          %v2040 = vpow.pop %v2039
          %v2041 = vmul.f32 %v2012, 1.442695
          %v2042 = vpow.pop %v2041
          %v2043 = vmul.f32 %v2013, 1.442695
          %v2044 = vpow.pop %v2043
          %v2045 = vmul.f32 %v2014, 1.442695
          %v2046 = vpow.pop %v2045
          %v2047 = vadd.f32 %v2016, 1.0
          %v2048 = vadd.f32 %v2018, 1.0
          %v2049 = vadd.f32 %v2020, 1.0
          %v2050 = vadd.f32 %v2022, 1.0
          %v2051 = vadd.f32 %v2024, 1.0
          %v2052 = vadd.f32 %v2026, 1.0
          %v2053 = vadd.f32 %v2028, 1.0
          %v2054 = vadd.f32 %v2030, 1.0
          %v2055 = vadd.f32 %v2032, 1.0
          %v2056 = vadd.f32 %v2034, 1.0
          %v2057 = vadd.f32 %v2036, 1.0
          %v2058 = vadd.f32 %v2038, 1.0
          %v2059 = vadd.f32 %v2040, 1.0
          %v2060 = vadd.f32 %v2042, 1.0
          %v2061 = vadd.f32 %v2044, 1.0
          %v2062 = vadd.f32 %v2046, 1.0
          %v2063 = vlog2.pop %v2047
          %v2064 = vmul.f32 %v2063, 0.6931472
          %v2065 = vlog2.pop %v2048
          %v2066 = vmul.f32 %v2065, 0.6931472
          %v2067 = vlog2.pop %v2049
          %v2068 = vmul.f32 %v2067, 0.6931472
          %v2069 = vlog2.pop %v2050
          %v2070 = vmul.f32 %v2069, 0.6931472
          %v2071 = vlog2.pop %v2051
          %v2072 = vmul.f32 %v2071, 0.6931472
          %v2073 = vlog2.pop %v2052
          %v2074 = vmul.f32 %v2073, 0.6931472
          %v2075 = vlog2.pop %v2053
          %v2076 = vmul.f32 %v2075, 0.6931472
          %v2077 = vlog2.pop %v2054
          %v2078 = vmul.f32 %v2077, 0.6931472
          %v2079 = vlog2.pop %v2055
          %v2080 = vmul.f32 %v2079, 0.6931472
          %v2081 = vlog2.pop %v2056
          %v2082 = vmul.f32 %v2081, 0.6931472
          %v2083 = vlog2.pop %v2057
          %v2084 = vmul.f32 %v2083, 0.6931472
          %v2085 = vlog2.pop %v2058
          %v2086 = vmul.f32 %v2085, 0.6931472
          %v2087 = vlog2.pop %v2059
          %v2088 = vmul.f32 %v2087, 0.6931472
          %v2089 = vlog2.pop %v2060
          %v2090 = vmul.f32 %v2089, 0.6931472
          %v2091 = vlog2.pop %v2061
          %v2092 = vmul.f32 %v2091, 0.6931472
          %v2093 = vlog2.pop %v2062
          %v2094 = vmul.f32 %v2093, 0.6931472
          %v2095 = vadd.f32 %v1967, %v2064
          %v2096 = vadd.f32 %v1968, %v2066
          %v2097 = vadd.f32 %v1969, %v2068
          %v2098 = vadd.f32 %v1970, %v2070
          %v2099 = vadd.f32 %v1971, %v2072
          %v2100 = vadd.f32 %v1972, %v2074
          %v2101 = vadd.f32 %v1973, %v2076
          %v2102 = vadd.f32 %v1974, %v2078
          %v2103 = vadd.f32 %v1975, %v2080
          %v2104 = vadd.f32 %v1976, %v2082
          %v2105 = vadd.f32 %v1977, %v2084
          %v2106 = vadd.f32 %v1978, %v2086
          %v2107 = vadd.f32 %v1979, %v2088
          %v2108 = vadd.f32 %v1980, %v2090
          %v2109 = vadd.f32 %v1981, %v2092
          %v2110 = vadd.f32 %v1982, %v2094
          %v2111 = vmax.f32 %v1920, 0.0
          %v2112 = vmax.f32 %v1922, 0.0
          %v2113 = vmax.f32 %v1924, 0.0
          %v2114 = vmax.f32 %v1926, 0.0
          %v2115 = vmax.f32 %v1928, 0.0
          %v2116 = vmax.f32 %v1930, 0.0
          %v2117 = vmax.f32 %v1932, 0.0
          %v2118 = vmax.f32 %v1934, 0.0
          %v2119 = vmax.f32 %v1936, 0.0
          %v2120 = vmax.f32 %v1938, 0.0
          %v2121 = vmax.f32 %v1940, 0.0
          %v2122 = vmax.f32 %v1942, 0.0
          %v2123 = vmax.f32 %v1944, 0.0
          %v2124 = vmax.f32 %v1946, 0.0
          %v2125 = vmax.f32 %v1948, 0.0
          %v2126 = vmax.f32 %v1950, 0.0
          %v2127 = vand.u32 2147483647, %v1920
          %v2128 = vand.u32 2147483647, %v1922
          %v2129 = vand.u32 2147483647, %v1924
          %v2130 = vand.u32 2147483647, %v1926
          %v2131 = vand.u32 2147483647, %v1928
          %v2132 = vand.u32 2147483647, %v1930
          %v2133 = vand.u32 2147483647, %v1932
          %v2134 = vand.u32 2147483647, %v1934
          %v2135 = vand.u32 2147483647, %v1936
          %v2136 = vand.u32 2147483647, %v1938
          %v2137 = vand.u32 2147483647, %v1940
          %v2138 = vand.u32 2147483647, %v1942
          %v2139 = vand.u32 2147483647, %v1944
          %v2140 = vand.u32 2147483647, %v1946
          %v2141 = vand.u32 2147483647, %v1948
          %v2142 = vand.u32 2147483647, %v1950
          %v2143 = vsub.f32 0.0, %v2127
          %v2144 = vsub.f32 0.0, %v2128
          %v2145 = vsub.f32 0.0, %v2129
          %v2146 = vsub.f32 0.0, %v2130
          %v2147 = vsub.f32 0.0, %v2131
          %v2148 = vsub.f32 0.0, %v2132
          %v2149 = vsub.f32 0.0, %v2133
          %v2150 = vsub.f32 0.0, %v2134
          %v2151 = vsub.f32 0.0, %v2135
          %v2152 = vsub.f32 0.0, %v2136
          %v2153 = vsub.f32 0.0, %v2137
          %v2154 = vsub.f32 0.0, %v2138
          %v2155 = vsub.f32 0.0, %v2139
          %v2156 = vsub.f32 0.0, %v2140
          %v2157 = vsub.f32 0.0, %v2141
          %v2158 = vsub.f32 0.0, %v2142
          %v2159 = vmul.f32 %v2143, 1.442695
          %v2160 = vpow.pop %v2159
          %v2161 = vmul.f32 %v2144, 1.442695
          %v2162 = vpow.pop %v2161
          %v2163 = vmul.f32 %v2145, 1.442695
          %v2164 = vpow.pop %v2163
          %v2165 = vmul.f32 %v2146, 1.442695
          %v2166 = vpow.pop %v2165
          %v2167 = vmul.f32 %v2147, 1.442695
          %v2168 = vpow.pop %v2167
          %v2169 = vmul.f32 %v2148, 1.442695
          %v2170 = vpow.pop %v2169
          %v2171 = vmul.f32 %v2149, 1.442695
          %v2172 = vpow.pop %v2171
          %v2173 = vmul.f32 %v2150, 1.442695
          %v2174 = vpow.pop %v2173
          %v2175 = vmul.f32 %v2151, 1.442695
          %v2176 = vpow.pop %v2175
          %v2177 = vmul.f32 %v2152, 1.442695
          %v2178 = vpow.pop %v2177
          %v2179 = vmul.f32 %v2153, 1.442695
          %v2180 = vpow.pop %v2179
          %v2181 = vmul.f32 %v2154, 1.442695
          %v2182 = vpow.pop %v2181
          %v2183 = vmul.f32 %v2155, 1.442695
          %v2184 = vpow.pop %v2183
          %v2185 = vmul.f32 %v2156, 1.442695
          %v2186 = vpow.pop %v2185
          %v2187 = vmul.f32 %v2157, 1.442695
          %v2188 = vpow.pop %v2187
          %v2189 = vmul.f32 %v2158, 1.442695
          %v2190 = vpow.pop %v2189
          %v2191 = vadd.f32 %v2160, 1.0
          %v2192 = vadd.f32 %v2162, 1.0
          %v2193 = vadd.f32 %v2164, 1.0
          %v2194 = vadd.f32 %v2166, 1.0
          %v2195 = vadd.f32 %v2168, 1.0
          %v2196 = vadd.f32 %v2170, 1.0
          %v2197 = vadd.f32 %v2172, 1.0
          %v2198 = vadd.f32 %v2174, 1.0
          %v2199 = vadd.f32 %v2176, 1.0
          %v2200 = vadd.f32 %v2178, 1.0
          %v2201 = vadd.f32 %v2180, 1.0
          %v2202 = vadd.f32 %v2182, 1.0
          %v2203 = vadd.f32 %v2184, 1.0
          %v2204 = vadd.f32 %v2186, 1.0
          %v2205 = vadd.f32 %v2188, 1.0
          %v2206 = vadd.f32 %v2190, 1.0
          %v2207 = vlog2.pop %v2191
          %v2208 = vmul.f32 %v2207, 0.6931472
          %v2209 = vlog2.pop %v2192
          %v2210 = vmul.f32 %v2209, 0.6931472
          %v2211 = vlog2.pop %v2193
          %v2212 = vmul.f32 %v2211, 0.6931472
          %v2213 = vlog2.pop %v2194
          %v2214 = vmul.f32 %v2213, 0.6931472
          %v2215 = vlog2.pop %v2195
          %v2216 = vmul.f32 %v2215, 0.6931472
          %v2217 = vlog2.pop %v2196
          %v2218 = vmul.f32 %v2217, 0.6931472
          %v2219 = vlog2.pop %v2197
          %v2220 = vmul.f32 %v2219, 0.6931472
          %v2221 = vlog2.pop %v2198
          %v2222 = vmul.f32 %v2221, 0.6931472
          %v2223 = vlog2.pop %v2199
          %v2224 = vmul.f32 %v2223, 0.6931472
          %v2225 = vlog2.pop %v2200
          %v2226 = vmul.f32 %v2225, 0.6931472
          %v2227 = vlog2.pop %v2201
          %v2228 = vmul.f32 %v2227, 0.6931472
          %v2229 = vlog2.pop %v2202
          %v2230 = vmul.f32 %v2229, 0.6931472
          %v2231 = vlog2.pop %v2203
          %v2232 = vmul.f32 %v2231, 0.6931472
          %v2233 = vlog2.pop %v2204
          %v2234 = vmul.f32 %v2233, 0.6931472
          %v2235 = vlog2.pop %v2205
          %v2236 = vmul.f32 %v2235, 0.6931472
          %v2237 = vlog2.pop %v2206
          %v2238 = vmul.f32 %v2237, 0.6931472
          %v2239 = vadd.f32 %v2111, %v2208
          %v2240 = vadd.f32 %v2112, %v2210
          %v2241 = vadd.f32 %v2113, %v2212
          %v2242 = vadd.f32 %v2114, %v2214
          %v2243 = vadd.f32 %v2115, %v2216
          %v2244 = vadd.f32 %v2116, %v2218
          %v2245 = vadd.f32 %v2117, %v2220
          %v2246 = vadd.f32 %v2118, %v2222
          %v2247 = vadd.f32 %v2119, %v2224
          %v2248 = vadd.f32 %v2120, %v2226
          %v2249 = vadd.f32 %v2121, %v2228
          %v2250 = vadd.f32 %v2122, %v2230
          %v2251 = vadd.f32 %v2123, %v2232
          %v2252 = vadd.f32 %v2124, %v2234
          %v2253 = vadd.f32 %v2125, %v2236
          %v2254 = vadd.f32 %v2126, %v2238
          %v2255 = vadd.f32 %v2095, %v2239
          %v2256 = vadd.f32 %v2096, %v2240
          %v2257 = vadd.f32 %v2097, %v2241
          %v2258 = vadd.f32 %v2098, %v2242
          %v2259 = vadd.f32 %v2099, %v2243
          %v2260 = vadd.f32 %v2100, %v2244
          %v2261 = vadd.f32 %v2101, %v2245
          %v2262 = vadd.f32 %v2102, %v2246
          %v2263 = vadd.f32 %v2103, %v2247
          %v2264 = vadd.f32 %v2104, %v2248
          %v2265 = vadd.f32 %v2105, %v2249
          %v2266 = vadd.f32 %v2106, %v2250
          %v2267 = vadd.f32 %v2107, %v2251
          %v2268 = vadd.f32 %v2108, %v2252
          %v2269 = vadd.f32 %v2109, %v2253
          %v2270 = vadd.f32 %v2110, %v2254
          %v2271 = vadd.f32 %v2255, %v2256
          %v2272 = vadd.f32 %v2271, %v2257
          %v2273 = vadd.f32 %v2272, %v2258
          %v2274 = vadd.f32 %v2273, %v2259
          %v2275 = vadd.f32 %v2274, %v2260
          %v2276 = vadd.f32 %v2275, %v2261
          %v2277 = vadd.f32 %v2276, %v2262
          %v2278 = vadd.f32 %v2277, %v2263
          %v2279 = vadd.f32 %v2278, %v2264
          %v2280 = vadd.f32 %v2279, %v2265
          %v2281 = vadd.f32 %v2280, %v2266
          %v2282 = vadd.f32 %v2281, %v2267
          %v2283 = vadd.f32 %v2282, %v2268
          %v2284 = vadd.f32 %v2283, %v2269
          %v2285 = vadd.f32 %v2284, %v2270
          %v2286 = vrot.slane %v2285, 4
          %v2287 = vadd.f32 %v2285, %v2286
          %v2288 = vrot.slane %v2287, 2
          %v2289 = vadd.f32 %v2287, %v2288
          %v2290 = vrot.slane %v2289, 1
          %v2291 = vadd.f32 %v2289, %v2290
          %v2292 = vmul.f32 %v2291, 0.0078125
          %vm2293 = vcmask 0
          %2294 = vst.msk [vmem:[#allocation8] sm:$0x1] %vm2293, %v2292
        $region48: #{skip_gram_loss.1} parent=35 // pred_fallthru
          _
        // Predicated region
        $region49: #{skip_gram_loss.1} parent=35 // pred_check
          %p2295 = pneg %p121
        $region50: #{skip_gram_loss.1} parent=35 // pred_check_branch
          %2297 = sbr.rel (%p2295) target = $region52
        $region51: #{skip_gram_loss.1} parent=35 // pred_region
          %2299 = vsyncadd [#allocation7], 0
          %s2301 = sshll.u32 [#allocation8], 4
          %s2302 = int_to_ptr.vmem [resolvable:$true] %s2301
          %s2303 = sshll.u32 %s4, 4
          %s2304 = int_to_ptr.hbm [resolvable:$true] %s2303
          %2306 = dma.vmem_to_hbm [thread:$0]  %s2302, 16, %s2304, [#allocation7]
        $region52: #{skip_gram_loss.1} parent=35 // pred_fallthru
          _
        // Predicated region
        $region53: #{skip_gram_loss.1} parent=35 // pred_check
          %p2307 = pneg %p121
        $region54: #{skip_gram_loss.1} parent=35 // pred_check_branch
          %2309 = sbr.rel (%p2307) target = $region56
        $region55: #{skip_gram_loss.1} parent=35 // pred_region
          %2311 = dma.done [#allocation7], 16
        $region56: #{skip_gram_loss.1} parent=35 // pred_fallthru
          _
      $region36: #{skip_gram_loss.1} parent=5 // pred_fallthru
        _
      %p2312 = scmp.le.s32.totalorder 2, %s14
      // Predicated region
      $region57: #{skip_gram_loss.1} parent=5 // pred_check
        %p2313 = pneg %p2312
      $region58: #{skip_gram_loss.1} parent=5 // pred_check_branch
        %2315 = sbr.rel (%p2313) target = $region60
      $region59: #{skip_gram_loss.1} parent=5 // pred_region
        %s2316 = ssub.s32 %s14, 2
      $region60: #{skip_gram_loss.1} parent=5 // pred_fallthru
        _
    $region6: #{skip_gram_loss.1} parent=1 // loop_footer
      %s18 = sadd.s32 1, %s14
    $region7: #{skip_gram_loss.1} parent=1 // loop_footer_branch
      %13 = sbr.rel target = $region3
    $region8: #{skip_gram_loss.1} parent=1 // loop_exit
      _
    %2317 = vsyncpa [#allocation6], 1
    %s2318 = scalar_lea.sflag [#allocation6], 1
    %2319 = vsyncpa %s2318, 1
    %2320 = vsyncpa [#allocation7], 1
    %s2321 = scalar_lea.sflag [#allocation7], 1
    %2322 = vsyncpa %s2321, 1

</llo_original>
